<compile_context>
chip_gen: v7x
topology: tpu7x:2x2x1
jax: 0.10.0
libtpu: 0.0.40
codegen_flags: <defaults>
</compile_context>

<pallas_src>
import functools

import jax
import jax.numpy as jnp
from jax.experimental import pallas as pl
from jax.experimental.pallas import tpu as pltpu


def _onlstm_kernel(x_ref, w_ref, const_ref, out_ref,
                   *, seq_len, batch, n_chunk, hidden):
    E = hidden
    n = n_chunk

    w = w_ref[...]                       # (2E, G)
    wih_t = w[:E, :]                     # (E, G)   input->gates weights (transposed)
    whh_t = w[E:, :]                     # (E, G)   recurrent weights   (transposed)
    c = const_ref[...]
    bias_row = c[0:1, :]                 # (1, G)   b_ih + b_hh, repacked column order
    tri_blk = c[8:8 + 2 * n, :2 * E]     # (2n, 2E) block-diag fused cumsum+chunk-expand

    # ---- Hoisted (non-recurrent) input projection for ALL time steps at once,
    # with both biases folded in: one (T*B, E) x (E, G) MXU op.
    proj = jnp.dot(x_ref[...], wih_t,
                   preferred_element_type=jnp.float32) + bias_row   # (T*B, G)

    hx = jnp.zeros((batch, E), jnp.float32)
    cx = jnp.zeros((batch, E), jnp.float32)

    # Lane masks hoisted out of the loop (JAX does not CSE broadcast_in_dim).
    lane_m = jax.lax.broadcasted_iota(jnp.int32, (batch, 2 * n), 1)
    is_in_seg = lane_m < n              # c_in segment of the master slab
    lane_e = jax.lax.broadcasted_iota(jnp.int32, (batch, 2 * E), 1)
    is_fg_half = lane_e < E             # c_fg half of the expanded slab

    # Fully unrolled recurrence (T is small and static); gives the scheduler
    # full cross-step visibility. TODO(synk): for large T switch to
    # lax.fori_loop(..., unroll=k) with hx/cx in VMEM scratch.
    for t in range(seq_len):
        r0 = t * batch

        # Single fused recurrent matmul per step: gates + master together.
        rec = proj[r0:r0 + batch] + jnp.dot(
            hx, whh_t, preferred_element_type=jnp.float32)           # (B, G)
        gates = rec[:, :4 * E]           # (B, 4E)  lanes 0..127 (vreg aligned)
        master = rec[:, 4 * E:]          # (B, 2n)  [c_in | c_fg]

        # Pair softmax over the two n-wide master segments with ONE exp.
        m_in = jnp.max(master[:, :n], axis=-1, keepdims=True)
        m_fg = jnp.max(master[:, n:], axis=-1, keepdims=True)
        e = jnp.exp(master - jnp.where(is_in_seg, m_in, m_fg))       # (B, 2n)

        # Fused cumsum + chunk-expansion for both master gates in ONE matmul;
        # the per-segment softmax denominators are the last-chunk columns of
        # the (unnormalized) cumsum, so normalization needs just ONE reciprocal.
        bu = jnp.dot(e, tri_blk, preferred_element_type=jnp.float32)  # (B, 2E)
        denom = jnp.where(is_fg_half, bu[:, E - 1:E], bu[:, 2 * E - 1:2 * E])
        scaled = bu * pl.reciprocal(denom, approx=False)
        c_fg_e = scaled[:, :E]           # cumsoftmax(c_fg), chunk-expanded
        c_in_e = 1.0 - scaled[:, E:]     # 1 - cumsoftmax(c_in), chunk-expanded

        # Gate columns: [out | in | forget | cell]; one sigmoid over the whole
        # 128-lane slab (cell lanes are discarded), one tanh on the cell block.
        sig = jax.nn.sigmoid(gates)
        out_g = sig[:, :E]
        in_g = sig[:, E:2 * E]
        fg_g = sig[:, 2 * E:3 * E]
        cell = jnp.tanh(gates[:, 3 * E:])

        overlap = c_fg_e * c_in_e
        fg = fg_g * overlap + (c_fg_e - overlap)
        ig = in_g * overlap + (c_in_e - overlap)
        cx = fg * cx + ig * cell
        hx = out_g * jnp.tanh(cx)

        # Lane-dense output slab: static 32-lane slice of the (B, T*E) buffer.
        out_ref[:, t * E:(t + 1) * E] = hx


def ordered_neuron_layer_forward(x, wih, bih, whh, bhh, *, chunk_size, dropout=0.0):
    """Eval-mode forward of OrderedNeuronLayer with a single ON-LSTM layer."""
    T, B, E = x.shape
    G = wih.shape[0]
    n = E // chunk_size
    assert G == 4 * E + 2 * n
    f32 = jnp.float32

    # LinearDropConnect eval-mode: effective recurrent weight = weight * (1 - dropout)
    whh_eff = whh * (1.0 - dropout)

    # Repack the fused output rows from the PyTorch order
    #   [c_in | c_fg | out | cell | in | forget]
    # to the kernel order
    #   [out | in | forget | cell | c_in | c_fg]
    # so the three sigmoid gates are contiguous, the tanh cell block is last of
    # the 4E gate lanes, and the master columns sit past lane 4E.
    def repack_rows(w):
        return jnp.concatenate([
            w[2 * n + 0 * E: 2 * n + 1 * E],   # out_gate
            w[2 * n + 2 * E: 2 * n + 3 * E],   # in_gate
            w[2 * n + 3 * E: 2 * n + 4 * E],   # forget_gate
            w[2 * n + 1 * E: 2 * n + 2 * E],   # cell
            w[0: 2 * n],                       # master [c_in | c_fg]
        ], axis=0)

    wih_t = jnp.asarray(repack_rows(wih).T, f32)         # (E, G)
    whh_t = jnp.asarray(repack_rows(whh_eff).T, f32)     # (E, G)
    w_slab = jnp.concatenate([wih_t, whh_t], axis=0)     # (2E, G)  one DMA

    b_cat = repack_rows((bih + bhh).astype(f32))         # (G,)  fold both biases

    # Fused cumsum + chunk-expansion matrix:
    #   (sm @ tri_exp)[b, col] == cumsum(sm)[b, col // chunk_size]
    idx = jnp.arange(n)
    cols = jnp.arange(E)
    tri = (idx[:, None] <= idx[None, :]).astype(f32)                    # (n, n)
    exp_m = (cols[None, :] // chunk_size == idx[:, None]).astype(f32)   # (n, E)
    tri_exp = tri @ exp_m                                               # (n, E)
    # Block-diagonal version acting on the lane-contiguous [c_in | c_fg] slab:
    # c_in rows -> output cols E..2E-1, c_fg rows -> output cols 0..E-1.
    z = jnp.zeros((n, E), f32)
    tri_blk = jnp.concatenate([
        jnp.concatenate([z, tri_exp], axis=1),
        jnp.concatenate([tri_exp, z], axis=1),
    ], axis=0)                                                          # (2n, 2E)

    # Const slab (one DMA): row 0 = bias row, rows 8..8+2n-1 / cols 0..2E-1 = tri_blk.
    const_rows = 8 + 2 * n
    const = jnp.zeros((const_rows, G), f32)
    const = const.at[0, :].set(b_cat)
    const = const.at[8:8 + 2 * n, :2 * E].set(tri_blk)

    x2 = x.reshape(T * B, E).astype(f32)

    kernel = functools.partial(_onlstm_kernel, seq_len=T, batch=B,
                               n_chunk=n, hidden=E)
    out2 = pl.pallas_call(
        kernel,
        out_shape=jax.ShapeDtypeStruct((B, T * E), f32),
        grid_spec=pltpu.PrefetchScalarGridSpec(
            num_scalar_prefetch=0,
            grid=(1,),   # single invocation; recurrence is an in-kernel loop
            in_specs=[
                pl.BlockSpec((T * B, E), lambda i: (0, 0)),        # x (all steps)
                pl.BlockSpec((2 * E, G), lambda i: (0, 0)),        # W_ih^T / W_hh^T slab
                pl.BlockSpec((const_rows, G), lambda i: (0, 0)),   # bias + tri_blk slab
            ],
            out_specs=pl.BlockSpec((B, T * E), lambda i: (0, 0)),  # lane-dense output
        ),
        compiler_params=pltpu.CompilerParams(
            dimension_semantics=("arbitrary",)),   # recurrence -> sequential
    )(x2, w_slab, const)

    # (B, T*E) -> (T, B, E)
    return out2.reshape(B, T, E).transpose(1, 0, 2)


def _reference_forward(x, wih, bih, whh, bhh, *, chunk_size, dropout=0.0):
    """Pure-JAX reference mirroring the PyTorch ONLSTMStack._forward (eval)."""
    T, B, E = x.shape
    n_chunk = E // chunk_size
    whh_eff = whh * (1.0 - dropout)
    t_input = jnp.einsum("tbe,ge->tbg", x, wih) + bih

    def cumsoftmax(v):
        return jnp.cumsum(jax.nn.softmax(v, axis=-1), axis=-1)

    def step(carry, ti):
        hx, cx = carry
        gates = ti + hx @ whh_eff.T + bhh
        c_in = gates[:, :n_chunk]
        c_fg = gates[:, n_chunk:2 * n_chunk]
        rest = gates[:, 2 * n_chunk:].reshape(B, 4 * n_chunk, chunk_size)
        out_g = rest[:, :n_chunk]
        cell = rest[:, n_chunk:2 * n_chunk]
        in_g = rest[:, 2 * n_chunk:3 * n_chunk]
        fg_g = rest[:, 3 * n_chunk:]
        c_in = (1.0 - cumsoftmax(c_in))[:, :, None]
        c_fg = cumsoftmax(c_fg)[:, :, None]
        in_g = jax.nn.sigmoid(in_g)
        fg_g = jax.nn.sigmoid(fg_g)
        cell = jnp.tanh(cell)
        out_g = jax.nn.sigmoid(out_g)
        overlap = c_fg * c_in
        fg_g = fg_g * overlap + (c_fg - overlap)
        in_g = in_g * overlap + (c_in - overlap)
        cy = fg_g * cx + in_g * cell
        hy = (out_g * jnp.tanh(cy)).reshape(B, E)
        return (hy, cy), hy

    init = (jnp.zeros((B, E), jnp.float32),
            jnp.zeros((B, n_chunk, chunk_size), jnp.float32))
    _, ys = jax.lax.scan(step, init, t_input)
    return ys


if __name__ == "__main__":
    # Small config consistent with the module's __init__.
    E = 32            # encoder_embed_dim (layer_sizes = [E, E] -> one ON-LSTM cell)
    CHUNK = 8         # chunk_size
    N_CHUNK = E // CHUNK
    G = 4 * E + 2 * N_CHUNK
    T, B = 8, 2       # (length, batch)
    DROPOUT = 0.0     # eval-mode; locked-dropout / drop-connect are no-ops

    key = jax.random.PRNGKey(0)
    kx, k1, k2, k3, k4 = jax.random.split(key, 5)
    x = jax.random.normal(kx, (T, B, E), jnp.float32)

    # Deterministic parameter init (PyTorch nn.Linear default: U(-1/sqrt(fan_in), +)).
    bound = 1.0 / (E ** 0.5)
    wih = jax.random.uniform(k1, (G, E), jnp.float32, -bound, bound)
    bih = jax.random.uniform(k2, (G,), jnp.float32, -bound, bound)
    whh = jax.random.uniform(k3, (G, E), jnp.float32, -bound, bound)
    bhh = jax.random.uniform(k4, (G,), jnp.float32, -bound, bound)

    # TODO(synk): bidirectional branch of OrderedNeuronLayer calls
    # F.linear(self.fc0(x)) without a weight argument (broken in PyTorch);
    # only the unidirectional path is implemented (encoder_bidirectional=False).

    out = ordered_neuron_layer_forward(x, wih, bih, whh, bhh,
                                       chunk_size=CHUNK, dropout=DROPOUT)
    out = jax.block_until_ready(out)

    ref = _reference_forward(x, wih, bih, whh, bhh,
                             chunk_size=CHUNK, dropout=DROPOUT)
    ref = jax.block_until_ready(ref)

    assert out.shape == (T, B, E), out.shape
    assert jnp.allclose(out, ref, atol=1e-4, rtol=1e-4), (
        float(jnp.max(jnp.abs(out - ref))))
    print("KERNEL_OK")
</pallas_src>

<mosaic_0001>
module attributes {stable_mosaic.version = 11 : i64} {
  func.func @_onlstm_kernel(%arg0: i32, %arg1: memref<16x32xf32, #tpu.memory_space<vmem>>, %arg2: memref<64x136xf32, #tpu.memory_space<vmem>>, %arg3: memref<16x136xf32, #tpu.memory_space<vmem>>, %arg4: memref<2x256xf32, #tpu.memory_space<vmem>>) attributes {dimension_semantics = [#tpu.dimension_semantics<arbitrary>], iteration_bounds = array<i64: 1>, scalar_prefetch = 0 : i64, scratch_operands = 0 : i64, tpu.core_type = #tpu.core_type<tc>, window_params = [{pipeline_mode = #tpu.pipeline_mode<synchronous>, transform_indices = @transform_0, window_bounds = array<i64: 16, 32>}, {pipeline_mode = #tpu.pipeline_mode<synchronous>, transform_indices = @transform_1, window_bounds = array<i64: 64, 136>}, {pipeline_mode = #tpu.pipeline_mode<synchronous>, transform_indices = @transform_2, window_bounds = array<i64: 16, 136>}, {pipeline_mode = #tpu.pipeline_mode<synchronous>, transform_indices = @transform_3, window_bounds = array<i64: 2, 256>}]} {
    %c0 = arith.constant 0 : index
    %c0_0 = arith.constant 0 : index
    %0 = vector.load %arg2[%c0, %c0_0] : memref<64x136xf32, #tpu.memory_space<vmem>>, vector<64x136xf32>
    %1 = vector.extract_strided_slice %0 {offsets = [0, 0], sizes = [32, 136], strides = [1, 1]} : vector<64x136xf32> to vector<32x136xf32>
    %2 = vector.extract_strided_slice %0 {offsets = [32, 0], sizes = [32, 136], strides = [1, 1]} : vector<64x136xf32> to vector<32x136xf32>
    %c0_1 = arith.constant 0 : index
    %c0_2 = arith.constant 0 : index
    %3 = vector.load %arg3[%c0_1, %c0_2] : memref<16x136xf32, #tpu.memory_space<vmem>>, vector<16x136xf32>
    %4 = vector.extract_strided_slice %3 {offsets = [0, 0], sizes = [1, 136], strides = [1, 1]} : vector<16x136xf32> to vector<1x136xf32>
    %5 = vector.extract_strided_slice %3 {offsets = [8, 0], sizes = [8, 64], strides = [1, 1]} : vector<16x136xf32> to vector<8x64xf32>
    %c0_3 = arith.constant 0 : index
    %c0_4 = arith.constant 0 : index
    %6 = vector.load %arg1[%c0_3, %c0_4] : memref<16x32xf32, #tpu.memory_space<vmem>>, vector<16x32xf32>
    %cst = arith.constant dense<0.000000e+00> : vector<16x136xf32>
    %7 = tpu.matmul %6, %1, %cst {dimension_numbers = #tpu.dot_dimension_numbers<[1], [0], [0], [1], [0, 0, 1, 1], [], []>} : vector<16x32xf32>, vector<32x136xf32>, vector<16x136xf32> -> vector<16x136xf32>
    %8 = vector.broadcast %4 : vector<1x136xf32> to vector<16x136xf32>
    %9 = arith.addf %7, %8 : vector<16x136xf32>
    %cst_5 = arith.constant 0.000000e+00 : f32
    %10 = vector.broadcast %cst_5 : f32 to vector<2x32xf32>
    %cst_6 = arith.constant 0.000000e+00 : f32
    %11 = vector.broadcast %cst_6 : f32 to vector<2x32xf32>
    %12 = tpu.iota {dimensions = array<i32: 1>} : vector<2x8xi32>
    %c4_i32 = arith.constant 4 : i32
    %13 = vector.broadcast %c4_i32 : i32 to vector<2x8xi32>
    %14 = arith.cmpi slt, %12, %13 : vector<2x8xi32>
    %15 = tpu.iota {dimensions = array<i32: 1>} : vector<2x64xi32>
    %c32_i32 = arith.constant 32 : i32
    %16 = vector.broadcast %c32_i32 : i32 to vector<2x64xi32>
    %17 = arith.cmpi slt, %15, %16 : vector<2x64xi32>
    %18 = vector.extract_strided_slice %9 {offsets = [0, 0], sizes = [2, 136], strides = [1, 1]} : vector<16x136xf32> to vector<2x136xf32>
    %cst_7 = arith.constant dense<0.000000e+00> : vector<2x136xf32>
    %19 = tpu.matmul %10, %2, %cst_7 {dimension_numbers = #tpu.dot_dimension_numbers<[1], [0], [0], [1], [0, 0, 1, 1], [], []>} : vector<2x32xf32>, vector<32x136xf32>, vector<2x136xf32> -> vector<2x136xf32>
    %20 = arith.addf %18, %19 : vector<2x136xf32>
    %21 = vector.extract_strided_slice %20 {offsets = [0, 0], sizes = [2, 128], strides = [1, 1]} : vector<2x136xf32> to vector<2x128xf32>
    %22 = vector.extract_strided_slice %20 {offsets = [0, 128], sizes = [2, 8], strides = [1, 1]} : vector<2x136xf32> to vector<2x8xf32>
    %23 = vector.extract_strided_slice %22 {offsets = [0, 0], sizes = [2, 4], strides = [1, 1]} : vector<2x8xf32> to vector<2x4xf32>
    %cst_8 = arith.constant dense<0xFF800000> : vector<2xf32>
    %24 = vector.multi_reduction <maximumf>, %23, %cst_8 [1] : vector<2x4xf32> to vector<2xf32>
    %25 = vector.shape_cast %24 : vector<2xf32> to vector<2x1xf32>
    %26 = vector.extract_strided_slice %22 {offsets = [0, 4], sizes = [2, 4], strides = [1, 1]} : vector<2x8xf32> to vector<2x4xf32>
    %cst_9 = arith.constant dense<0xFF800000> : vector<2xf32>
    %27 = vector.multi_reduction <maximumf>, %26, %cst_9 [1] : vector<2x4xf32> to vector<2xf32>
    %28 = vector.shape_cast %27 : vector<2xf32> to vector<2x1xf32>
    %29 = vector.shape_cast %25 : vector<2x1xf32> to vector<2x1xf32>
    %30 = vector.broadcast %29 : vector<2x1xf32> to vector<2x8xf32>
    %31 = vector.shape_cast %28 : vector<2x1xf32> to vector<2x1xf32>
    %32 = vector.broadcast %31 : vector<2x1xf32> to vector<2x8xf32>
    %33 = arith.select %14, %30, %32 : vector<2x8xi1>, vector<2x8xf32>
    %34 = arith.subf %22, %33 : vector<2x8xf32>
    %35 = math.exp %34 : vector<2x8xf32>
    %cst_10 = arith.constant dense<0.000000e+00> : vector<2x64xf32>
    %36 = tpu.matmul %35, %5, %cst_10 {dimension_numbers = #tpu.dot_dimension_numbers<[1], [0], [0], [1], [0, 0, 1, 1], [], []>} : vector<2x8xf32>, vector<8x64xf32>, vector<2x64xf32> -> vector<2x64xf32>
    %37 = vector.extract_strided_slice %36 {offsets = [0, 31], sizes = [2, 1], strides = [1, 1]} : vector<2x64xf32> to vector<2x1xf32>
    %38 = vector.extract_strided_slice %36 {offsets = [0, 63], sizes = [2, 1], strides = [1, 1]} : vector<2x64xf32> to vector<2x1xf32>
    %39 = vector.shape_cast %37 : vector<2x1xf32> to vector<2x1xf32>
    %40 = vector.broadcast %39 : vector<2x1xf32> to vector<2x64xf32>
    %41 = vector.shape_cast %38 : vector<2x1xf32> to vector<2x1xf32>
    %42 = vector.broadcast %41 : vector<2x1xf32> to vector<2x64xf32>
    %43 = arith.select %17, %40, %42 : vector<2x64xi1>, vector<2x64xf32>
    %44 = tpu.reciprocal %43 : vector<2x64xf32> -> vector<2x64xf32>
    %45 = arith.mulf %36, %44 : vector<2x64xf32>
    %46 = vector.extract_strided_slice %45 {offsets = [0, 0], sizes = [2, 32], strides = [1, 1]} : vector<2x64xf32> to vector<2x32xf32>
    %47 = vector.extract_strided_slice %45 {offsets = [0, 32], sizes = [2, 32], strides = [1, 1]} : vector<2x64xf32> to vector<2x32xf32>
    %cst_11 = arith.constant 1.000000e+00 : f32
    %48 = vector.broadcast %cst_11 : f32 to vector<2x32xf32>
    %49 = arith.subf %48, %47 : vector<2x32xf32>
    %50 = arith.negf %21 : vector<2x128xf32>
    %51 = math.exp %50 : vector<2x128xf32>
    %cst_12 = arith.constant 1.000000e+00 : f32
    %52 = vector.broadcast %cst_12 : f32 to vector<2x128xf32>
    %53 = arith.addf %52, %51 : vector<2x128xf32>
    %54 = arith.divf %52, %53 : vector<2x128xf32>
    %55 = vector.extract_strided_slice %54 {offsets = [0, 0], sizes = [2, 32], strides = [1, 1]} : vector<2x128xf32> to vector<2x32xf32>
    %56 = vector.extract_strided_slice %54 {offsets = [0, 32], sizes = [2, 32], strides = [1, 1]} : vector<2x128xf32> to vector<2x32xf32>
    %57 = vector.extract_strided_slice %54 {offsets = [0, 64], sizes = [2, 32], strides = [1, 1]} : vector<2x128xf32> to vector<2x32xf32>
    %58 = vector.extract_strided_slice %21 {offsets = [0, 96], sizes = [2, 32], strides = [1, 1]} : vector<2x128xf32> to vector<2x32xf32>
    %59 = math.tanh %58 : vector<2x32xf32>
    %60 = arith.mulf %46, %49 : vector<2x32xf32>
    %61 = arith.mulf %57, %60 : vector<2x32xf32>
    %62 = arith.subf %46, %60 : vector<2x32xf32>
    %63 = arith.addf %61, %62 : vector<2x32xf32>
    %64 = arith.mulf %56, %60 : vector<2x32xf32>
    %65 = arith.subf %49, %60 : vector<2x32xf32>
    %66 = arith.addf %64, %65 : vector<2x32xf32>
    %67 = arith.mulf %63, %11 : vector<2x32xf32>
    %68 = arith.mulf %66, %59 : vector<2x32xf32>
    %69 = arith.addf %67, %68 : vector<2x32xf32>
    %70 = math.tanh %69 : vector<2x32xf32>
    %71 = arith.mulf %55, %70 : vector<2x32xf32>
    %c0_13 = arith.constant 0 : index
    %c0_14 = arith.constant 0 : index
    %72 = vector.load %arg4[%c0_13, %c0_14] : memref<2x256xf32, #tpu.memory_space<vmem>>, vector<2x32xf32>
    tpu.vector_store %arg4[%c0_13, %c0_14], %71 {strides = array<i32>} : memref<2x256xf32, #tpu.memory_space<vmem>>, vector<2x32xf32>,
    %73 = vector.extract_strided_slice %9 {offsets = [2, 0], sizes = [2, 136], strides = [1, 1]} : vector<16x136xf32> to vector<2x136xf32>
    %cst_15 = arith.constant dense<0.000000e+00> : vector<2x136xf32>
    %74 = tpu.matmul %71, %2, %cst_15 {dimension_numbers = #tpu.dot_dimension_numbers<[1], [0], [0], [1], [0, 0, 1, 1], [], []>} : vector<2x32xf32>, vector<32x136xf32>, vector<2x136xf32> -> vector<2x136xf32>
    %75 = arith.addf %73, %74 : vector<2x136xf32>
    %76 = vector.extract_strided_slice %75 {offsets = [0, 0], sizes = [2, 128], strides = [1, 1]} : vector<2x136xf32> to vector<2x128xf32>
    %77 = vector.extract_strided_slice %75 {offsets = [0, 128], sizes = [2, 8], strides = [1, 1]} : vector<2x136xf32> to vector<2x8xf32>
    %78 = vector.extract_strided_slice %77 {offsets = [0, 0], sizes = [2, 4], strides = [1, 1]} : vector<2x8xf32> to vector<2x4xf32>
    %cst_16 = arith.constant dense<0xFF800000> : vector<2xf32>
    %79 = vector.multi_reduction <maximumf>, %78, %cst_16 [1] : vector<2x4xf32> to vector<2xf32>
    %80 = vector.shape_cast %79 : vector<2xf32> to vector<2x1xf32>
    %81 = vector.extract_strided_slice %77 {offsets = [0, 4], sizes = [2, 4], strides = [1, 1]} : vector<2x8xf32> to vector<2x4xf32>
    %cst_17 = arith.constant dense<0xFF800000> : vector<2xf32>
    %82 = vector.multi_reduction <maximumf>, %81, %cst_17 [1] : vector<2x4xf32> to vector<2xf32>
    %83 = vector.shape_cast %82 : vector<2xf32> to vector<2x1xf32>
    %84 = vector.shape_cast %80 : vector<2x1xf32> to vector<2x1xf32>
    %85 = vector.broadcast %84 : vector<2x1xf32> to vector<2x8xf32>
    %86 = vector.shape_cast %83 : vector<2x1xf32> to vector<2x1xf32>
    %87 = vector.broadcast %86 : vector<2x1xf32> to vector<2x8xf32>
    %88 = arith.select %14, %85, %87 : vector<2x8xi1>, vector<2x8xf32>
    %89 = arith.subf %77, %88 : vector<2x8xf32>
    %90 = math.exp %89 : vector<2x8xf32>
    %cst_18 = arith.constant dense<0.000000e+00> : vector<2x64xf32>
    %91 = tpu.matmul %90, %5, %cst_18 {dimension_numbers = #tpu.dot_dimension_numbers<[1], [0], [0], [1], [0, 0, 1, 1], [], []>} : vector<2x8xf32>, vector<8x64xf32>, vector<2x64xf32> -> vector<2x64xf32>
    %92 = vector.extract_strided_slice %91 {offsets = [0, 31], sizes = [2, 1], strides = [1, 1]} : vector<2x64xf32> to vector<2x1xf32>
    %93 = vector.extract_strided_slice %91 {offsets = [0, 63], sizes = [2, 1], strides = [1, 1]} : vector<2x64xf32> to vector<2x1xf32>
    %94 = vector.shape_cast %92 : vector<2x1xf32> to vector<2x1xf32>
    %95 = vector.broadcast %94 : vector<2x1xf32> to vector<2x64xf32>
    %96 = vector.shape_cast %93 : vector<2x1xf32> to vector<2x1xf32>
    %97 = vector.broadcast %96 : vector<2x1xf32> to vector<2x64xf32>
    %98 = arith.select %17, %95, %97 : vector<2x64xi1>, vector<2x64xf32>
    %99 = tpu.reciprocal %98 : vector<2x64xf32> -> vector<2x64xf32>
    %100 = arith.mulf %91, %99 : vector<2x64xf32>
    %101 = vector.extract_strided_slice %100 {offsets = [0, 0], sizes = [2, 32], strides = [1, 1]} : vector<2x64xf32> to vector<2x32xf32>
    %102 = vector.extract_strided_slice %100 {offsets = [0, 32], sizes = [2, 32], strides = [1, 1]} : vector<2x64xf32> to vector<2x32xf32>
    %cst_19 = arith.constant 1.000000e+00 : f32
    %103 = vector.broadcast %cst_19 : f32 to vector<2x32xf32>
    %104 = arith.subf %103, %102 : vector<2x32xf32>
    %105 = arith.negf %76 : vector<2x128xf32>
    %106 = math.exp %105 : vector<2x128xf32>
    %cst_20 = arith.constant 1.000000e+00 : f32
    %107 = vector.broadcast %cst_20 : f32 to vector<2x128xf32>
    %108 = arith.addf %107, %106 : vector<2x128xf32>
    %109 = arith.divf %107, %108 : vector<2x128xf32>
    %110 = vector.extract_strided_slice %109 {offsets = [0, 0], sizes = [2, 32], strides = [1, 1]} : vector<2x128xf32> to vector<2x32xf32>
    %111 = vector.extract_strided_slice %109 {offsets = [0, 32], sizes = [2, 32], strides = [1, 1]} : vector<2x128xf32> to vector<2x32xf32>
    %112 = vector.extract_strided_slice %109 {offsets = [0, 64], sizes = [2, 32], strides = [1, 1]} : vector<2x128xf32> to vector<2x32xf32>
    %113 = vector.extract_strided_slice %76 {offsets = [0, 96], sizes = [2, 32], strides = [1, 1]} : vector<2x128xf32> to vector<2x32xf32>
    %114 = math.tanh %113 : vector<2x32xf32>
    %115 = arith.mulf %101, %104 : vector<2x32xf32>
    %116 = arith.mulf %112, %115 : vector<2x32xf32>
    %117 = arith.subf %101, %115 : vector<2x32xf32>
    %118 = arith.addf %116, %117 : vector<2x32xf32>
    %119 = arith.mulf %111, %115 : vector<2x32xf32>
    %120 = arith.subf %104, %115 : vector<2x32xf32>
    %121 = arith.addf %119, %120 : vector<2x32xf32>
    %122 = arith.mulf %118, %69 : vector<2x32xf32>
    %123 = arith.mulf %121, %114 : vector<2x32xf32>
    %124 = arith.addf %122, %123 : vector<2x32xf32>
    %125 = math.tanh %124 : vector<2x32xf32>
    %126 = arith.mulf %110, %125 : vector<2x32xf32>
    %c0_21 = arith.constant 0 : index
    %c32 = arith.constant 32 : index
    %127 = vector.load %arg4[%c0_21, %c32] : memref<2x256xf32, #tpu.memory_space<vmem>>, vector<2x32xf32>
    tpu.vector_store %arg4[%c0_21, %c32], %126 {strides = array<i32>} : memref<2x256xf32, #tpu.memory_space<vmem>>, vector<2x32xf32>,
    %128 = vector.extract_strided_slice %9 {offsets = [4, 0], sizes = [2, 136], strides = [1, 1]} : vector<16x136xf32> to vector<2x136xf32>
    %cst_22 = arith.constant dense<0.000000e+00> : vector<2x136xf32>
    %129 = tpu.matmul %126, %2, %cst_22 {dimension_numbers = #tpu.dot_dimension_numbers<[1], [0], [0], [1], [0, 0, 1, 1], [], []>} : vector<2x32xf32>, vector<32x136xf32>, vector<2x136xf32> -> vector<2x136xf32>
    %130 = arith.addf %128, %129 : vector<2x136xf32>
    %131 = vector.extract_strided_slice %130 {offsets = [0, 0], sizes = [2, 128], strides = [1, 1]} : vector<2x136xf32> to vector<2x128xf32>
    %132 = vector.extract_strided_slice %130 {offsets = [0, 128], sizes = [2, 8], strides = [1, 1]} : vector<2x136xf32> to vector<2x8xf32>
    %133 = vector.extract_strided_slice %132 {offsets = [0, 0], sizes = [2, 4], strides = [1, 1]} : vector<2x8xf32> to vector<2x4xf32>
    %cst_23 = arith.constant dense<0xFF800000> : vector<2xf32>
    %134 = vector.multi_reduction <maximumf>, %133, %cst_23 [1] : vector<2x4xf32> to vector<2xf32>
    %135 = vector.shape_cast %134 : vector<2xf32> to vector<2x1xf32>
    %136 = vector.extract_strided_slice %132 {offsets = [0, 4], sizes = [2, 4], strides = [1, 1]} : vector<2x8xf32> to vector<2x4xf32>
    %cst_24 = arith.constant dense<0xFF800000> : vector<2xf32>
    %137 = vector.multi_reduction <maximumf>, %136, %cst_24 [1] : vector<2x4xf32> to vector<2xf32>
    %138 = vector.shape_cast %137 : vector<2xf32> to vector<2x1xf32>
    %139 = vector.shape_cast %135 : vector<2x1xf32> to vector<2x1xf32>
    %140 = vector.broadcast %139 : vector<2x1xf32> to vector<2x8xf32>
    %141 = vector.shape_cast %138 : vector<2x1xf32> to vector<2x1xf32>
    %142 = vector.broadcast %141 : vector<2x1xf32> to vector<2x8xf32>
    %143 = arith.select %14, %140, %142 : vector<2x8xi1>, vector<2x8xf32>
    %144 = arith.subf %132, %143 : vector<2x8xf32>
    %145 = math.exp %144 : vector<2x8xf32>
    %cst_25 = arith.constant dense<0.000000e+00> : vector<2x64xf32>
    %146 = tpu.matmul %145, %5, %cst_25 {dimension_numbers = #tpu.dot_dimension_numbers<[1], [0], [0], [1], [0, 0, 1, 1], [], []>} : vector<2x8xf32>, vector<8x64xf32>, vector<2x64xf32> -> vector<2x64xf32>
    %147 = vector.extract_strided_slice %146 {offsets = [0, 31], sizes = [2, 1], strides = [1, 1]} : vector<2x64xf32> to vector<2x1xf32>
    %148 = vector.extract_strided_slice %146 {offsets = [0, 63], sizes = [2, 1], strides = [1, 1]} : vector<2x64xf32> to vector<2x1xf32>
    %149 = vector.shape_cast %147 : vector<2x1xf32> to vector<2x1xf32>
    %150 = vector.broadcast %149 : vector<2x1xf32> to vector<2x64xf32>
    %151 = vector.shape_cast %148 : vector<2x1xf32> to vector<2x1xf32>
    %152 = vector.broadcast %151 : vector<2x1xf32> to vector<2x64xf32>
    %153 = arith.select %17, %150, %152 : vector<2x64xi1>, vector<2x64xf32>
    %154 = tpu.reciprocal %153 : vector<2x64xf32> -> vector<2x64xf32>
    %155 = arith.mulf %146, %154 : vector<2x64xf32>
    %156 = vector.extract_strided_slice %155 {offsets = [0, 0], sizes = [2, 32], strides = [1, 1]} : vector<2x64xf32> to vector<2x32xf32>
    %157 = vector.extract_strided_slice %155 {offsets = [0, 32], sizes = [2, 32], strides = [1, 1]} : vector<2x64xf32> to vector<2x32xf32>
    %cst_26 = arith.constant 1.000000e+00 : f32
    %158 = vector.broadcast %cst_26 : f32 to vector<2x32xf32>
    %159 = arith.subf %158, %157 : vector<2x32xf32>
    %160 = arith.negf %131 : vector<2x128xf32>
    %161 = math.exp %160 : vector<2x128xf32>
    %cst_27 = arith.constant 1.000000e+00 : f32
    %162 = vector.broadcast %cst_27 : f32 to vector<2x128xf32>
    %163 = arith.addf %162, %161 : vector<2x128xf32>
    %164 = arith.divf %162, %163 : vector<2x128xf32>
    %165 = vector.extract_strided_slice %164 {offsets = [0, 0], sizes = [2, 32], strides = [1, 1]} : vector<2x128xf32> to vector<2x32xf32>
    %166 = vector.extract_strided_slice %164 {offsets = [0, 32], sizes = [2, 32], strides = [1, 1]} : vector<2x128xf32> to vector<2x32xf32>
    %167 = vector.extract_strided_slice %164 {offsets = [0, 64], sizes = [2, 32], strides = [1, 1]} : vector<2x128xf32> to vector<2x32xf32>
    %168 = vector.extract_strided_slice %131 {offsets = [0, 96], sizes = [2, 32], strides = [1, 1]} : vector<2x128xf32> to vector<2x32xf32>
    %169 = math.tanh %168 : vector<2x32xf32>
    %170 = arith.mulf %156, %159 : vector<2x32xf32>
    %171 = arith.mulf %167, %170 : vector<2x32xf32>
    %172 = arith.subf %156, %170 : vector<2x32xf32>
    %173 = arith.addf %171, %172 : vector<2x32xf32>
    %174 = arith.mulf %166, %170 : vector<2x32xf32>
    %175 = arith.subf %159, %170 : vector<2x32xf32>
    %176 = arith.addf %174, %175 : vector<2x32xf32>
    %177 = arith.mulf %173, %124 : vector<2x32xf32>
    %178 = arith.mulf %176, %169 : vector<2x32xf32>
    %179 = arith.addf %177, %178 : vector<2x32xf32>
    %180 = math.tanh %179 : vector<2x32xf32>
    %181 = arith.mulf %165, %180 : vector<2x32xf32>
    %c0_28 = arith.constant 0 : index
    %c64 = arith.constant 64 : index
    %182 = vector.load %arg4[%c0_28, %c64] : memref<2x256xf32, #tpu.memory_space<vmem>>, vector<2x32xf32>
    tpu.vector_store %arg4[%c0_28, %c64], %181 {strides = array<i32>} : memref<2x256xf32, #tpu.memory_space<vmem>>, vector<2x32xf32>,
    %183 = vector.extract_strided_slice %9 {offsets = [6, 0], sizes = [2, 136], strides = [1, 1]} : vector<16x136xf32> to vector<2x136xf32>
    %cst_29 = arith.constant dense<0.000000e+00> : vector<2x136xf32>
    %184 = tpu.matmul %181, %2, %cst_29 {dimension_numbers = #tpu.dot_dimension_numbers<[1], [0], [0], [1], [0, 0, 1, 1], [], []>} : vector<2x32xf32>, vector<32x136xf32>, vector<2x136xf32> -> vector<2x136xf32>
    %185 = arith.addf %183, %184 : vector<2x136xf32>
    %186 = vector.extract_strided_slice %185 {offsets = [0, 0], sizes = [2, 128], strides = [1, 1]} : vector<2x136xf32> to vector<2x128xf32>
    %187 = vector.extract_strided_slice %185 {offsets = [0, 128], sizes = [2, 8], strides = [1, 1]} : vector<2x136xf32> to vector<2x8xf32>
    %188 = vector.extract_strided_slice %187 {offsets = [0, 0], sizes = [2, 4], strides = [1, 1]} : vector<2x8xf32> to vector<2x4xf32>
    %cst_30 = arith.constant dense<0xFF800000> : vector<2xf32>
    %189 = vector.multi_reduction <maximumf>, %188, %cst_30 [1] : vector<2x4xf32> to vector<2xf32>
    %190 = vector.shape_cast %189 : vector<2xf32> to vector<2x1xf32>
    %191 = vector.extract_strided_slice %187 {offsets = [0, 4], sizes = [2, 4], strides = [1, 1]} : vector<2x8xf32> to vector<2x4xf32>
    %cst_31 = arith.constant dense<0xFF800000> : vector<2xf32>
    %192 = vector.multi_reduction <maximumf>, %191, %cst_31 [1] : vector<2x4xf32> to vector<2xf32>
    %193 = vector.shape_cast %192 : vector<2xf32> to vector<2x1xf32>
    %194 = vector.shape_cast %190 : vector<2x1xf32> to vector<2x1xf32>
    %195 = vector.broadcast %194 : vector<2x1xf32> to vector<2x8xf32>
    %196 = vector.shape_cast %193 : vector<2x1xf32> to vector<2x1xf32>
    %197 = vector.broadcast %196 : vector<2x1xf32> to vector<2x8xf32>
    %198 = arith.select %14, %195, %197 : vector<2x8xi1>, vector<2x8xf32>
    %199 = arith.subf %187, %198 : vector<2x8xf32>
    %200 = math.exp %199 : vector<2x8xf32>
    %cst_32 = arith.constant dense<0.000000e+00> : vector<2x64xf32>
    %201 = tpu.matmul %200, %5, %cst_32 {dimension_numbers = #tpu.dot_dimension_numbers<[1], [0], [0], [1], [0, 0, 1, 1], [], []>} : vector<2x8xf32>, vector<8x64xf32>, vector<2x64xf32> -> vector<2x64xf32>
    %202 = vector.extract_strided_slice %201 {offsets = [0, 31], sizes = [2, 1], strides = [1, 1]} : vector<2x64xf32> to vector<2x1xf32>
    %203 = vector.extract_strided_slice %201 {offsets = [0, 63], sizes = [2, 1], strides = [1, 1]} : vector<2x64xf32> to vector<2x1xf32>
    %204 = vector.shape_cast %202 : vector<2x1xf32> to vector<2x1xf32>
    %205 = vector.broadcast %204 : vector<2x1xf32> to vector<2x64xf32>
    %206 = vector.shape_cast %203 : vector<2x1xf32> to vector<2x1xf32>
    %207 = vector.broadcast %206 : vector<2x1xf32> to vector<2x64xf32>
    %208 = arith.select %17, %205, %207 : vector<2x64xi1>, vector<2x64xf32>
    %209 = tpu.reciprocal %208 : vector<2x64xf32> -> vector<2x64xf32>
    %210 = arith.mulf %201, %209 : vector<2x64xf32>
    %211 = vector.extract_strided_slice %210 {offsets = [0, 0], sizes = [2, 32], strides = [1, 1]} : vector<2x64xf32> to vector<2x32xf32>
    %212 = vector.extract_strided_slice %210 {offsets = [0, 32], sizes = [2, 32], strides = [1, 1]} : vector<2x64xf32> to vector<2x32xf32>
    %cst_33 = arith.constant 1.000000e+00 : f32
    %213 = vector.broadcast %cst_33 : f32 to vector<2x32xf32>
    %214 = arith.subf %213, %212 : vector<2x32xf32>
    %215 = arith.negf %186 : vector<2x128xf32>
    %216 = math.exp %215 : vector<2x128xf32>
    %cst_34 = arith.constant 1.000000e+00 : f32
    %217 = vector.broadcast %cst_34 : f32 to vector<2x128xf32>
    %218 = arith.addf %217, %216 : vector<2x128xf32>
    %219 = arith.divf %217, %218 : vector<2x128xf32>
    %220 = vector.extract_strided_slice %219 {offsets = [0, 0], sizes = [2, 32], strides = [1, 1]} : vector<2x128xf32> to vector<2x32xf32>
    %221 = vector.extract_strided_slice %219 {offsets = [0, 32], sizes = [2, 32], strides = [1, 1]} : vector<2x128xf32> to vector<2x32xf32>
    %222 = vector.extract_strided_slice %219 {offsets = [0, 64], sizes = [2, 32], strides = [1, 1]} : vector<2x128xf32> to vector<2x32xf32>
    %223 = vector.extract_strided_slice %186 {offsets = [0, 96], sizes = [2, 32], strides = [1, 1]} : vector<2x128xf32> to vector<2x32xf32>
    %224 = math.tanh %223 : vector<2x32xf32>
    %225 = arith.mulf %211, %214 : vector<2x32xf32>
    %226 = arith.mulf %222, %225 : vector<2x32xf32>
    %227 = arith.subf %211, %225 : vector<2x32xf32>
    %228 = arith.addf %226, %227 : vector<2x32xf32>
    %229 = arith.mulf %221, %225 : vector<2x32xf32>
    %230 = arith.subf %214, %225 : vector<2x32xf32>
    %231 = arith.addf %229, %230 : vector<2x32xf32>
    %232 = arith.mulf %228, %179 : vector<2x32xf32>
    %233 = arith.mulf %231, %224 : vector<2x32xf32>
    %234 = arith.addf %232, %233 : vector<2x32xf32>
    %235 = math.tanh %234 : vector<2x32xf32>
    %236 = arith.mulf %220, %235 : vector<2x32xf32>
    %c0_35 = arith.constant 0 : index
    %c96 = arith.constant 96 : index
    %237 = vector.load %arg4[%c0_35, %c96] : memref<2x256xf32, #tpu.memory_space<vmem>>, vector<2x32xf32>
    tpu.vector_store %arg4[%c0_35, %c96], %236 {strides = array<i32>} : memref<2x256xf32, #tpu.memory_space<vmem>>, vector<2x32xf32>,
    %238 = vector.extract_strided_slice %9 {offsets = [8, 0], sizes = [2, 136], strides = [1, 1]} : vector<16x136xf32> to vector<2x136xf32>
    %cst_36 = arith.constant dense<0.000000e+00> : vector<2x136xf32>
    %239 = tpu.matmul %236, %2, %cst_36 {dimension_numbers = #tpu.dot_dimension_numbers<[1], [0], [0], [1], [0, 0, 1, 1], [], []>} : vector<2x32xf32>, vector<32x136xf32>, vector<2x136xf32> -> vector<2x136xf32>
    %240 = arith.addf %238, %239 : vector<2x136xf32>
    %241 = vector.extract_strided_slice %240 {offsets = [0, 0], sizes = [2, 128], strides = [1, 1]} : vector<2x136xf32> to vector<2x128xf32>
    %242 = vector.extract_strided_slice %240 {offsets = [0, 128], sizes = [2, 8], strides = [1, 1]} : vector<2x136xf32> to vector<2x8xf32>
    %243 = vector.extract_strided_slice %242 {offsets = [0, 0], sizes = [2, 4], strides = [1, 1]} : vector<2x8xf32> to vector<2x4xf32>
    %cst_37 = arith.constant dense<0xFF800000> : vector<2xf32>
    %244 = vector.multi_reduction <maximumf>, %243, %cst_37 [1] : vector<2x4xf32> to vector<2xf32>
    %245 = vector.shape_cast %244 : vector<2xf32> to vector<2x1xf32>
    %246 = vector.extract_strided_slice %242 {offsets = [0, 4], sizes = [2, 4], strides = [1, 1]} : vector<2x8xf32> to vector<2x4xf32>
    %cst_38 = arith.constant dense<0xFF800000> : vector<2xf32>
    %247 = vector.multi_reduction <maximumf>, %246, %cst_38 [1] : vector<2x4xf32> to vector<2xf32>
    %248 = vector.shape_cast %247 : vector<2xf32> to vector<2x1xf32>
    %249 = vector.shape_cast %245 : vector<2x1xf32> to vector<2x1xf32>
    %250 = vector.broadcast %249 : vector<2x1xf32> to vector<2x8xf32>
    %251 = vector.shape_cast %248 : vector<2x1xf32> to vector<2x1xf32>
    %252 = vector.broadcast %251 : vector<2x1xf32> to vector<2x8xf32>
    %253 = arith.select %14, %250, %252 : vector<2x8xi1>, vector<2x8xf32>
    %254 = arith.subf %242, %253 : vector<2x8xf32>
    %255 = math.exp %254 : vector<2x8xf32>
    %cst_39 = arith.constant dense<0.000000e+00> : vector<2x64xf32>
    %256 = tpu.matmul %255, %5, %cst_39 {dimension_numbers = #tpu.dot_dimension_numbers<[1], [0], [0], [1], [0, 0, 1, 1], [], []>} : vector<2x8xf32>, vector<8x64xf32>, vector<2x64xf32> -> vector<2x64xf32>
    %257 = vector.extract_strided_slice %256 {offsets = [0, 31], sizes = [2, 1], strides = [1, 1]} : vector<2x64xf32> to vector<2x1xf32>
    %258 = vector.extract_strided_slice %256 {offsets = [0, 63], sizes = [2, 1], strides = [1, 1]} : vector<2x64xf32> to vector<2x1xf32>
    %259 = vector.shape_cast %257 : vector<2x1xf32> to vector<2x1xf32>
    %260 = vector.broadcast %259 : vector<2x1xf32> to vector<2x64xf32>
    %261 = vector.shape_cast %258 : vector<2x1xf32> to vector<2x1xf32>
    %262 = vector.broadcast %261 : vector<2x1xf32> to vector<2x64xf32>
    %263 = arith.select %17, %260, %262 : vector<2x64xi1>, vector<2x64xf32>
    %264 = tpu.reciprocal %263 : vector<2x64xf32> -> vector<2x64xf32>
    %265 = arith.mulf %256, %264 : vector<2x64xf32>
    %266 = vector.extract_strided_slice %265 {offsets = [0, 0], sizes = [2, 32], strides = [1, 1]} : vector<2x64xf32> to vector<2x32xf32>
    %267 = vector.extract_strided_slice %265 {offsets = [0, 32], sizes = [2, 32], strides = [1, 1]} : vector<2x64xf32> to vector<2x32xf32>
    %cst_40 = arith.constant 1.000000e+00 : f32
    %268 = vector.broadcast %cst_40 : f32 to vector<2x32xf32>
    %269 = arith.subf %268, %267 : vector<2x32xf32>
    %270 = arith.negf %241 : vector<2x128xf32>
    %271 = math.exp %270 : vector<2x128xf32>
    %cst_41 = arith.constant 1.000000e+00 : f32
    %272 = vector.broadcast %cst_41 : f32 to vector<2x128xf32>
    %273 = arith.addf %272, %271 : vector<2x128xf32>
    %274 = arith.divf %272, %273 : vector<2x128xf32>
    %275 = vector.extract_strided_slice %274 {offsets = [0, 0], sizes = [2, 32], strides = [1, 1]} : vector<2x128xf32> to vector<2x32xf32>
    %276 = vector.extract_strided_slice %274 {offsets = [0, 32], sizes = [2, 32], strides = [1, 1]} : vector<2x128xf32> to vector<2x32xf32>
    %277 = vector.extract_strided_slice %274 {offsets = [0, 64], sizes = [2, 32], strides = [1, 1]} : vector<2x128xf32> to vector<2x32xf32>
    %278 = vector.extract_strided_slice %241 {offsets = [0, 96], sizes = [2, 32], strides = [1, 1]} : vector<2x128xf32> to vector<2x32xf32>
    %279 = math.tanh %278 : vector<2x32xf32>
    %280 = arith.mulf %266, %269 : vector<2x32xf32>
    %281 = arith.mulf %277, %280 : vector<2x32xf32>
    %282 = arith.subf %266, %280 : vector<2x32xf32>
    %283 = arith.addf %281, %282 : vector<2x32xf32>
    %284 = arith.mulf %276, %280 : vector<2x32xf32>
    %285 = arith.subf %269, %280 : vector<2x32xf32>
    %286 = arith.addf %284, %285 : vector<2x32xf32>
    %287 = arith.mulf %283, %234 : vector<2x32xf32>
    %288 = arith.mulf %286, %279 : vector<2x32xf32>
    %289 = arith.addf %287, %288 : vector<2x32xf32>
    %290 = math.tanh %289 : vector<2x32xf32>
    %291 = arith.mulf %275, %290 : vector<2x32xf32>
    %c0_42 = arith.constant 0 : index
    %c128 = arith.constant 128 : index
    %292 = vector.load %arg4[%c0_42, %c128] : memref<2x256xf32, #tpu.memory_space<vmem>>, vector<2x32xf32>
    tpu.vector_store %arg4[%c0_42, %c128], %291 {strides = array<i32>} : memref<2x256xf32, #tpu.memory_space<vmem>>, vector<2x32xf32>,
    %293 = vector.extract_strided_slice %9 {offsets = [10, 0], sizes = [2, 136], strides = [1, 1]} : vector<16x136xf32> to vector<2x136xf32>
    %cst_43 = arith.constant dense<0.000000e+00> : vector<2x136xf32>
    %294 = tpu.matmul %291, %2, %cst_43 {dimension_numbers = #tpu.dot_dimension_numbers<[1], [0], [0], [1], [0, 0, 1, 1], [], []>} : vector<2x32xf32>, vector<32x136xf32>, vector<2x136xf32> -> vector<2x136xf32>
    %295 = arith.addf %293, %294 : vector<2x136xf32>
    %296 = vector.extract_strided_slice %295 {offsets = [0, 0], sizes = [2, 128], strides = [1, 1]} : vector<2x136xf32> to vector<2x128xf32>
    %297 = vector.extract_strided_slice %295 {offsets = [0, 128], sizes = [2, 8], strides = [1, 1]} : vector<2x136xf32> to vector<2x8xf32>
    %298 = vector.extract_strided_slice %297 {offsets = [0, 0], sizes = [2, 4], strides = [1, 1]} : vector<2x8xf32> to vector<2x4xf32>
    %cst_44 = arith.constant dense<0xFF800000> : vector<2xf32>
    %299 = vector.multi_reduction <maximumf>, %298, %cst_44 [1] : vector<2x4xf32> to vector<2xf32>
    %300 = vector.shape_cast %299 : vector<2xf32> to vector<2x1xf32>
    %301 = vector.extract_strided_slice %297 {offsets = [0, 4], sizes = [2, 4], strides = [1, 1]} : vector<2x8xf32> to vector<2x4xf32>
    %cst_45 = arith.constant dense<0xFF800000> : vector<2xf32>
    %302 = vector.multi_reduction <maximumf>, %301, %cst_45 [1] : vector<2x4xf32> to vector<2xf32>
    %303 = vector.shape_cast %302 : vector<2xf32> to vector<2x1xf32>
    %304 = vector.shape_cast %300 : vector<2x1xf32> to vector<2x1xf32>
    %305 = vector.broadcast %304 : vector<2x1xf32> to vector<2x8xf32>
    %306 = vector.shape_cast %303 : vector<2x1xf32> to vector<2x1xf32>
    %307 = vector.broadcast %306 : vector<2x1xf32> to vector<2x8xf32>
    %308 = arith.select %14, %305, %307 : vector<2x8xi1>, vector<2x8xf32>
    %309 = arith.subf %297, %308 : vector<2x8xf32>
    %310 = math.exp %309 : vector<2x8xf32>
    %cst_46 = arith.constant dense<0.000000e+00> : vector<2x64xf32>
    %311 = tpu.matmul %310, %5, %cst_46 {dimension_numbers = #tpu.dot_dimension_numbers<[1], [0], [0], [1], [0, 0, 1, 1], [], []>} : vector<2x8xf32>, vector<8x64xf32>, vector<2x64xf32> -> vector<2x64xf32>
    %312 = vector.extract_strided_slice %311 {offsets = [0, 31], sizes = [2, 1], strides = [1, 1]} : vector<2x64xf32> to vector<2x1xf32>
    %313 = vector.extract_strided_slice %311 {offsets = [0, 63], sizes = [2, 1], strides = [1, 1]} : vector<2x64xf32> to vector<2x1xf32>
    %314 = vector.shape_cast %312 : vector<2x1xf32> to vector<2x1xf32>
    %315 = vector.broadcast %314 : vector<2x1xf32> to vector<2x64xf32>
    %316 = vector.shape_cast %313 : vector<2x1xf32> to vector<2x1xf32>
    %317 = vector.broadcast %316 : vector<2x1xf32> to vector<2x64xf32>
    %318 = arith.select %17, %315, %317 : vector<2x64xi1>, vector<2x64xf32>
    %319 = tpu.reciprocal %318 : vector<2x64xf32> -> vector<2x64xf32>
    %320 = arith.mulf %311, %319 : vector<2x64xf32>
    %321 = vector.extract_strided_slice %320 {offsets = [0, 0], sizes = [2, 32], strides = [1, 1]} : vector<2x64xf32> to vector<2x32xf32>
    %322 = vector.extract_strided_slice %320 {offsets = [0, 32], sizes = [2, 32], strides = [1, 1]} : vector<2x64xf32> to vector<2x32xf32>
    %cst_47 = arith.constant 1.000000e+00 : f32
    %323 = vector.broadcast %cst_47 : f32 to vector<2x32xf32>
    %324 = arith.subf %323, %322 : vector<2x32xf32>
    %325 = arith.negf %296 : vector<2x128xf32>
    %326 = math.exp %325 : vector<2x128xf32>
    %cst_48 = arith.constant 1.000000e+00 : f32
    %327 = vector.broadcast %cst_48 : f32 to vector<2x128xf32>
    %328 = arith.addf %327, %326 : vector<2x128xf32>
    %329 = arith.divf %327, %328 : vector<2x128xf32>
    %330 = vector.extract_strided_slice %329 {offsets = [0, 0], sizes = [2, 32], strides = [1, 1]} : vector<2x128xf32> to vector<2x32xf32>
    %331 = vector.extract_strided_slice %329 {offsets = [0, 32], sizes = [2, 32], strides = [1, 1]} : vector<2x128xf32> to vector<2x32xf32>
    %332 = vector.extract_strided_slice %329 {offsets = [0, 64], sizes = [2, 32], strides = [1, 1]} : vector<2x128xf32> to vector<2x32xf32>
    %333 = vector.extract_strided_slice %296 {offsets = [0, 96], sizes = [2, 32], strides = [1, 1]} : vector<2x128xf32> to vector<2x32xf32>
    %334 = math.tanh %333 : vector<2x32xf32>
    %335 = arith.mulf %321, %324 : vector<2x32xf32>
    %336 = arith.mulf %332, %335 : vector<2x32xf32>
    %337 = arith.subf %321, %335 : vector<2x32xf32>
    %338 = arith.addf %336, %337 : vector<2x32xf32>
    %339 = arith.mulf %331, %335 : vector<2x32xf32>
    %340 = arith.subf %324, %335 : vector<2x32xf32>
    %341 = arith.addf %339, %340 : vector<2x32xf32>
    %342 = arith.mulf %338, %289 : vector<2x32xf32>
    %343 = arith.mulf %341, %334 : vector<2x32xf32>
    %344 = arith.addf %342, %343 : vector<2x32xf32>
    %345 = math.tanh %344 : vector<2x32xf32>
    %346 = arith.mulf %330, %345 : vector<2x32xf32>
    %c0_49 = arith.constant 0 : index
    %c160 = arith.constant 160 : index
    %347 = vector.load %arg4[%c0_49, %c160] : memref<2x256xf32, #tpu.memory_space<vmem>>, vector<2x32xf32>
    tpu.vector_store %arg4[%c0_49, %c160], %346 {strides = array<i32>} : memref<2x256xf32, #tpu.memory_space<vmem>>, vector<2x32xf32>,
    %348 = vector.extract_strided_slice %9 {offsets = [12, 0], sizes = [2, 136], strides = [1, 1]} : vector<16x136xf32> to vector<2x136xf32>
    %cst_50 = arith.constant dense<0.000000e+00> : vector<2x136xf32>
    %349 = tpu.matmul %346, %2, %cst_50 {dimension_numbers = #tpu.dot_dimension_numbers<[1], [0], [0], [1], [0, 0, 1, 1], [], []>} : vector<2x32xf32>, vector<32x136xf32>, vector<2x136xf32> -> vector<2x136xf32>
    %350 = arith.addf %348, %349 : vector<2x136xf32>
    %351 = vector.extract_strided_slice %350 {offsets = [0, 0], sizes = [2, 128], strides = [1, 1]} : vector<2x136xf32> to vector<2x128xf32>
    %352 = vector.extract_strided_slice %350 {offsets = [0, 128], sizes = [2, 8], strides = [1, 1]} : vector<2x136xf32> to vector<2x8xf32>
    %353 = vector.extract_strided_slice %352 {offsets = [0, 0], sizes = [2, 4], strides = [1, 1]} : vector<2x8xf32> to vector<2x4xf32>
    %cst_51 = arith.constant dense<0xFF800000> : vector<2xf32>
    %354 = vector.multi_reduction <maximumf>, %353, %cst_51 [1] : vector<2x4xf32> to vector<2xf32>
    %355 = vector.shape_cast %354 : vector<2xf32> to vector<2x1xf32>
    %356 = vector.extract_strided_slice %352 {offsets = [0, 4], sizes = [2, 4], strides = [1, 1]} : vector<2x8xf32> to vector<2x4xf32>
    %cst_52 = arith.constant dense<0xFF800000> : vector<2xf32>
    %357 = vector.multi_reduction <maximumf>, %356, %cst_52 [1] : vector<2x4xf32> to vector<2xf32>
    %358 = vector.shape_cast %357 : vector<2xf32> to vector<2x1xf32>
    %359 = vector.shape_cast %355 : vector<2x1xf32> to vector<2x1xf32>
    %360 = vector.broadcast %359 : vector<2x1xf32> to vector<2x8xf32>
    %361 = vector.shape_cast %358 : vector<2x1xf32> to vector<2x1xf32>
    %362 = vector.broadcast %361 : vector<2x1xf32> to vector<2x8xf32>
    %363 = arith.select %14, %360, %362 : vector<2x8xi1>, vector<2x8xf32>
    %364 = arith.subf %352, %363 : vector<2x8xf32>
    %365 = math.exp %364 : vector<2x8xf32>
    %cst_53 = arith.constant dense<0.000000e+00> : vector<2x64xf32>
    %366 = tpu.matmul %365, %5, %cst_53 {dimension_numbers = #tpu.dot_dimension_numbers<[1], [0], [0], [1], [0, 0, 1, 1], [], []>} : vector<2x8xf32>, vector<8x64xf32>, vector<2x64xf32> -> vector<2x64xf32>
    %367 = vector.extract_strided_slice %366 {offsets = [0, 31], sizes = [2, 1], strides = [1, 1]} : vector<2x64xf32> to vector<2x1xf32>
    %368 = vector.extract_strided_slice %366 {offsets = [0, 63], sizes = [2, 1], strides = [1, 1]} : vector<2x64xf32> to vector<2x1xf32>
    %369 = vector.shape_cast %367 : vector<2x1xf32> to vector<2x1xf32>
    %370 = vector.broadcast %369 : vector<2x1xf32> to vector<2x64xf32>
    %371 = vector.shape_cast %368 : vector<2x1xf32> to vector<2x1xf32>
    %372 = vector.broadcast %371 : vector<2x1xf32> to vector<2x64xf32>
    %373 = arith.select %17, %370, %372 : vector<2x64xi1>, vector<2x64xf32>
    %374 = tpu.reciprocal %373 : vector<2x64xf32> -> vector<2x64xf32>
    %375 = arith.mulf %366, %374 : vector<2x64xf32>
    %376 = vector.extract_strided_slice %375 {offsets = [0, 0], sizes = [2, 32], strides = [1, 1]} : vector<2x64xf32> to vector<2x32xf32>
    %377 = vector.extract_strided_slice %375 {offsets = [0, 32], sizes = [2, 32], strides = [1, 1]} : vector<2x64xf32> to vector<2x32xf32>
    %cst_54 = arith.constant 1.000000e+00 : f32
    %378 = vector.broadcast %cst_54 : f32 to vector<2x32xf32>
    %379 = arith.subf %378, %377 : vector<2x32xf32>
    %380 = arith.negf %351 : vector<2x128xf32>
    %381 = math.exp %380 : vector<2x128xf32>
    %cst_55 = arith.constant 1.000000e+00 : f32
    %382 = vector.broadcast %cst_55 : f32 to vector<2x128xf32>
    %383 = arith.addf %382, %381 : vector<2x128xf32>
    %384 = arith.divf %382, %383 : vector<2x128xf32>
    %385 = vector.extract_strided_slice %384 {offsets = [0, 0], sizes = [2, 32], strides = [1, 1]} : vector<2x128xf32> to vector<2x32xf32>
    %386 = vector.extract_strided_slice %384 {offsets = [0, 32], sizes = [2, 32], strides = [1, 1]} : vector<2x128xf32> to vector<2x32xf32>
    %387 = vector.extract_strided_slice %384 {offsets = [0, 64], sizes = [2, 32], strides = [1, 1]} : vector<2x128xf32> to vector<2x32xf32>
    %388 = vector.extract_strided_slice %351 {offsets = [0, 96], sizes = [2, 32], strides = [1, 1]} : vector<2x128xf32> to vector<2x32xf32>
    %389 = math.tanh %388 : vector<2x32xf32>
    %390 = arith.mulf %376, %379 : vector<2x32xf32>
    %391 = arith.mulf %387, %390 : vector<2x32xf32>
    %392 = arith.subf %376, %390 : vector<2x32xf32>
    %393 = arith.addf %391, %392 : vector<2x32xf32>
    %394 = arith.mulf %386, %390 : vector<2x32xf32>
    %395 = arith.subf %379, %390 : vector<2x32xf32>
    %396 = arith.addf %394, %395 : vector<2x32xf32>
    %397 = arith.mulf %393, %344 : vector<2x32xf32>
    %398 = arith.mulf %396, %389 : vector<2x32xf32>
    %399 = arith.addf %397, %398 : vector<2x32xf32>
    %400 = math.tanh %399 : vector<2x32xf32>
    %401 = arith.mulf %385, %400 : vector<2x32xf32>
    %c0_56 = arith.constant 0 : index
    %c192 = arith.constant 192 : index
    %402 = vector.load %arg4[%c0_56, %c192] : memref<2x256xf32, #tpu.memory_space<vmem>>, vector<2x32xf32>
    tpu.vector_store %arg4[%c0_56, %c192], %401 {strides = array<i32>} : memref<2x256xf32, #tpu.memory_space<vmem>>, vector<2x32xf32>,
    %403 = vector.extract_strided_slice %9 {offsets = [14, 0], sizes = [2, 136], strides = [1, 1]} : vector<16x136xf32> to vector<2x136xf32>
    %cst_57 = arith.constant dense<0.000000e+00> : vector<2x136xf32>
    %404 = tpu.matmul %401, %2, %cst_57 {dimension_numbers = #tpu.dot_dimension_numbers<[1], [0], [0], [1], [0, 0, 1, 1], [], []>} : vector<2x32xf32>, vector<32x136xf32>, vector<2x136xf32> -> vector<2x136xf32>
    %405 = arith.addf %403, %404 : vector<2x136xf32>
    %406 = vector.extract_strided_slice %405 {offsets = [0, 0], sizes = [2, 128], strides = [1, 1]} : vector<2x136xf32> to vector<2x128xf32>
    %407 = vector.extract_strided_slice %405 {offsets = [0, 128], sizes = [2, 8], strides = [1, 1]} : vector<2x136xf32> to vector<2x8xf32>
    %408 = vector.extract_strided_slice %407 {offsets = [0, 0], sizes = [2, 4], strides = [1, 1]} : vector<2x8xf32> to vector<2x4xf32>
    %cst_58 = arith.constant dense<0xFF800000> : vector<2xf32>
    %409 = vector.multi_reduction <maximumf>, %408, %cst_58 [1] : vector<2x4xf32> to vector<2xf32>
    %410 = vector.shape_cast %409 : vector<2xf32> to vector<2x1xf32>
    %411 = vector.extract_strided_slice %407 {offsets = [0, 4], sizes = [2, 4], strides = [1, 1]} : vector<2x8xf32> to vector<2x4xf32>
    %cst_59 = arith.constant dense<0xFF800000> : vector<2xf32>
    %412 = vector.multi_reduction <maximumf>, %411, %cst_59 [1] : vector<2x4xf32> to vector<2xf32>
    %413 = vector.shape_cast %412 : vector<2xf32> to vector<2x1xf32>
    %414 = vector.shape_cast %410 : vector<2x1xf32> to vector<2x1xf32>
    %415 = vector.broadcast %414 : vector<2x1xf32> to vector<2x8xf32>
    %416 = vector.shape_cast %413 : vector<2x1xf32> to vector<2x1xf32>
    %417 = vector.broadcast %416 : vector<2x1xf32> to vector<2x8xf32>
    %418 = arith.select %14, %415, %417 : vector<2x8xi1>, vector<2x8xf32>
    %419 = arith.subf %407, %418 : vector<2x8xf32>
    %420 = math.exp %419 : vector<2x8xf32>
    %cst_60 = arith.constant dense<0.000000e+00> : vector<2x64xf32>
    %421 = tpu.matmul %420, %5, %cst_60 {dimension_numbers = #tpu.dot_dimension_numbers<[1], [0], [0], [1], [0, 0, 1, 1], [], []>} : vector<2x8xf32>, vector<8x64xf32>, vector<2x64xf32> -> vector<2x64xf32>
    %422 = vector.extract_strided_slice %421 {offsets = [0, 31], sizes = [2, 1], strides = [1, 1]} : vector<2x64xf32> to vector<2x1xf32>
    %423 = vector.extract_strided_slice %421 {offsets = [0, 63], sizes = [2, 1], strides = [1, 1]} : vector<2x64xf32> to vector<2x1xf32>
    %424 = vector.shape_cast %422 : vector<2x1xf32> to vector<2x1xf32>
    %425 = vector.broadcast %424 : vector<2x1xf32> to vector<2x64xf32>
    %426 = vector.shape_cast %423 : vector<2x1xf32> to vector<2x1xf32>
    %427 = vector.broadcast %426 : vector<2x1xf32> to vector<2x64xf32>
    %428 = arith.select %17, %425, %427 : vector<2x64xi1>, vector<2x64xf32>
    %429 = tpu.reciprocal %428 : vector<2x64xf32> -> vector<2x64xf32>
    %430 = arith.mulf %421, %429 : vector<2x64xf32>
    %431 = vector.extract_strided_slice %430 {offsets = [0, 0], sizes = [2, 32], strides = [1, 1]} : vector<2x64xf32> to vector<2x32xf32>
    %432 = vector.extract_strided_slice %430 {offsets = [0, 32], sizes = [2, 32], strides = [1, 1]} : vector<2x64xf32> to vector<2x32xf32>
    %cst_61 = arith.constant 1.000000e+00 : f32
    %433 = vector.broadcast %cst_61 : f32 to vector<2x32xf32>
    %434 = arith.subf %433, %432 : vector<2x32xf32>
    %435 = arith.negf %406 : vector<2x128xf32>
    %436 = math.exp %435 : vector<2x128xf32>
    %cst_62 = arith.constant 1.000000e+00 : f32
    %437 = vector.broadcast %cst_62 : f32 to vector<2x128xf32>
    %438 = arith.addf %437, %436 : vector<2x128xf32>
    %439 = arith.divf %437, %438 : vector<2x128xf32>
    %440 = vector.extract_strided_slice %439 {offsets = [0, 0], sizes = [2, 32], strides = [1, 1]} : vector<2x128xf32> to vector<2x32xf32>
    %441 = vector.extract_strided_slice %439 {offsets = [0, 32], sizes = [2, 32], strides = [1, 1]} : vector<2x128xf32> to vector<2x32xf32>
    %442 = vector.extract_strided_slice %439 {offsets = [0, 64], sizes = [2, 32], strides = [1, 1]} : vector<2x128xf32> to vector<2x32xf32>
    %443 = vector.extract_strided_slice %406 {offsets = [0, 96], sizes = [2, 32], strides = [1, 1]} : vector<2x128xf32> to vector<2x32xf32>
    %444 = math.tanh %443 : vector<2x32xf32>
    %445 = arith.mulf %431, %434 : vector<2x32xf32>
    %446 = arith.mulf %442, %445 : vector<2x32xf32>
    %447 = arith.subf %431, %445 : vector<2x32xf32>
    %448 = arith.addf %446, %447 : vector<2x32xf32>
    %449 = arith.mulf %441, %445 : vector<2x32xf32>
    %450 = arith.subf %434, %445 : vector<2x32xf32>
    %451 = arith.addf %449, %450 : vector<2x32xf32>
    %452 = arith.mulf %448, %399 : vector<2x32xf32>
    %453 = arith.mulf %451, %444 : vector<2x32xf32>
    %454 = arith.addf %452, %453 : vector<2x32xf32>
    %455 = math.tanh %454 : vector<2x32xf32>
    %456 = arith.mulf %440, %455 : vector<2x32xf32>
    %c0_63 = arith.constant 0 : index
    %c224 = arith.constant 224 : index
    %457 = vector.load %arg4[%c0_63, %c224] : memref<2x256xf32, #tpu.memory_space<vmem>>, vector<2x32xf32>
    tpu.vector_store %arg4[%c0_63, %c224], %456 {strides = array<i32>} : memref<2x256xf32, #tpu.memory_space<vmem>>, vector<2x32xf32>,
    return
  }
  func.func @transform_0(%arg0: i32) -> (i32, i32) {
    %c0_i32 = arith.constant 0 : i32
    %c0_i32_0 = arith.constant 0 : i32
    %c0_i32_1 = arith.constant 0 : i32
    return %c0_i32, %c0_i32_0 : i32, i32
  }
  func.func @transform_1(%arg0: i32) -> (i32, i32) {
    %c0_i32 = arith.constant 0 : i32
    %c0_i32_0 = arith.constant 0 : i32
    %c0_i32_1 = arith.constant 0 : i32
    return %c0_i32, %c0_i32_0 : i32, i32
  }
  func.func @transform_2(%arg0: i32) -> (i32, i32) {
    %c0_i32 = arith.constant 0 : i32
    %c0_i32_0 = arith.constant 0 : i32
    %c0_i32_1 = arith.constant 0 : i32
    return %c0_i32, %c0_i32_0 : i32, i32
  }
  func.func @transform_3(%arg0: i32) -> (i32, i32) {
    %c0_i32 = arith.constant 0 : i32
    %c0_i32_0 = arith.constant 0 : i32
    %c0_i32_1 = arith.constant 0 : i32
    return %c0_i32, %c0_i32_0 : i32, i32
  }
}

</mosaic_0001>

<llo_original>
// kernel: tpu_custom_call.1
$region0: #{tpu_custom_call.1}
  #allocation0 [shape = 'u32[]', space=smem, size = 0x4, offset = 0x4, fixed_abs, tag = 'smem constant byte address 0x4 - core index']
  #allocation1 [shape = 'u32[144,128]{1,0:T(1,128)}', space=vmem, size = 0x12000, scoped, tag = 'internal scratch']
  %s0 = inlined_call_operand.hbm [shape: f32[16,32], index: 0, kind: input, shape index: {}]
  %s1 = inlined_call_operand.hbm [shape: f32[64,136], index: 1, kind: input, shape index: {}]
  %s2 = inlined_call_operand.hbm [shape: f32[16,136], index: 2, kind: input, shape index: {}]
  %s3 = inlined_call_operand.hbm [shape: f32[2,256], index: 3, kind: output, shape index: {}]
  %s4 = sld [smem:[#allocation0]]
  $region34: #{tpu_custom_call.1} parent=0
    _
  %s6 = ssub.s32 1, %s4
  %s7 = scalar_select 0, %s6, %s4
  $region1: #{tpu_custom_call.1} parent=0
    #allocation2 [shape = 'u8[8192]{0}', space=vmem, size = 0x2000, scoped, tag = 'input window, operand 0, single buffered']
    #allocation3 [shape = 's32[1]{0}', space=sflag, size = 0x4, scoped, tag = 'scoped memory for tpu_custom_call.1']
    #allocation4 [shape = 's32[1]{0}', space=sflag, size = 0x4, scoped, tag = 'scoped memory for tpu_custom_call.1']
    #allocation5 [shape = 'u8[65536]{0}', space=vmem, size = 0x10000, scoped, tag = 'input window, operand 1, single buffered']
    #allocation6 [shape = 's32[1]{0}', space=sflag, size = 0x4, scoped, tag = 'scoped memory for tpu_custom_call.1']
    #allocation7 [shape = 'u8[16384]{0}', space=vmem, size = 0x4000, scoped, tag = 'input window, operand 2, single buffered']
    #allocation8 [shape = 'u8[2048]{0}', space=vmem, size = 0x800, scoped, tag = 'output window, operand 0, single buffered']
    %8 = vsyncpa [#allocation3], 0
    %9 = vsyncpa [#allocation6], 0
    %10 = vsyncpa [#allocation4], 0
    // Predicated region
    $region2: #{tpu_custom_call.1} parent=1 // pred_check
      _
    $region3: #{tpu_custom_call.1} parent=1 // pred_check_branch
      %12 = sbr.rel (0) target = $region5
    $region4: #{tpu_custom_call.1} parent=1 // pred_region
      %s14 = ssub.s32 256, 256
      %15 = vsyncadd [#allocation3], %s14
      %s16 = sshll.u32 [#allocation2], 4
      %s17 = int_to_ptr.vmem [resolvable:$true] %s16
      %22 = dma.hbm_to_vmem [thread:$0]  %s0, 256, %s17, [#allocation3], 128, 128, 8
    $region5: #{tpu_custom_call.1} parent=1 // pred_fallthru
      _
    // Predicated region
    $region6: #{tpu_custom_call.1} parent=1 // pred_check
      _
    $region7: #{tpu_custom_call.1} parent=1 // pred_check_branch
      %24 = sbr.rel (0) target = $region9
    $region8: #{tpu_custom_call.1} parent=1 // pred_region
      %s26 = ssub.s32 2048, 2048
      %27 = vsyncadd [#allocation6], %s26
      %s28 = sshll.u32 [#allocation5], 4
      %s29 = int_to_ptr.vmem [resolvable:$true] %s28
      %34 = dma.hbm_to_vmem [thread:$0]  %s1, 2048, %s29, [#allocation6], 256, 256, 16
    $region9: #{tpu_custom_call.1} parent=1 // pred_fallthru
      _
    // Predicated region
    $region10: #{tpu_custom_call.1} parent=1 // pred_check
      _
    $region11: #{tpu_custom_call.1} parent=1 // pred_check_branch
      %36 = sbr.rel (0) target = $region13
    $region12: #{tpu_custom_call.1} parent=1 // pred_region
      %s38 = ssub.s32 512, 512
      %39 = vsyncadd [#allocation6], %s38
      %s40 = sshll.u32 [#allocation7], 4
      %s41 = int_to_ptr.vmem [resolvable:$true] %s40
      %46 = dma.hbm_to_vmem [thread:$0]  %s2, 512, %s41, [#allocation6], 256, 256, 16
    $region13: #{tpu_custom_call.1} parent=1 // pred_fallthru
      _
    // Predicated region
    $region14: #{tpu_custom_call.1} parent=1 // pred_check
      _
    $region15: #{tpu_custom_call.1} parent=1 // pred_check_branch
      %48 = sbr.rel (0) target = $region17
    $region16: #{tpu_custom_call.1} parent=1 // pred_region
      %49 = dma.done [#allocation3], 256
    $region17: #{tpu_custom_call.1} parent=1 // pred_fallthru
      _
    // Predicated region
    $region18: #{tpu_custom_call.1} parent=1 // pred_check
      _
    $region19: #{tpu_custom_call.1} parent=1 // pred_check_branch
      %51 = sbr.rel (0) target = $region21
    $region20: #{tpu_custom_call.1} parent=1 // pred_region
      %52 = dma.done [#allocation6], 2048
    $region21: #{tpu_custom_call.1} parent=1 // pred_fallthru
      _
    // Predicated region
    $region22: #{tpu_custom_call.1} parent=1 // pred_check
      _
    $region23: #{tpu_custom_call.1} parent=1 // pred_check_branch
      %54 = sbr.rel (0) target = $region25
    $region24: #{tpu_custom_call.1} parent=1 // pred_region
      %55 = dma.done [#allocation6], 512
    $region25: #{tpu_custom_call.1} parent=1 // pred_fallthru
      _
    %v56 = vld [vmem:[#allocation5] sm:$0xff]
    %v57 = vld [vmem:[#allocation5 + $0x8] sm:$0xff]
    %v58 = vld [vmem:[#allocation5 + $0x10] sm:$0xff]
    %v59 = vld [vmem:[#allocation5 + $0x18] sm:$0xff]
    %v60 = vld [vmem:[#allocation5 + $0x20] sm:$0xff]
    %v61 = vld [vmem:[#allocation5 + $0x28] sm:$0xff]
    %v62 = vld [vmem:[#allocation5 + $0x30] sm:$0xff]
    %v63 = vld [vmem:[#allocation5 + $0x38] sm:$0xff]
    %v64 = vld [vmem:[#allocation5 + $0x40] sm:$0xff]
    %v65 = vld [vmem:[#allocation5 + $0x48] sm:$0xff]
    %v66 = vld [vmem:[#allocation5 + $0x50] sm:$0xff]
    %v67 = vld [vmem:[#allocation5 + $0x58] sm:$0xff]
    %v68 = vld [vmem:[#allocation5 + $0x60] sm:$0xff]
    %v69 = vld [vmem:[#allocation5 + $0x68] sm:$0xff]
    %v70 = vld [vmem:[#allocation5 + $0x70] sm:$0xff]
    %v71 = vld [vmem:[#allocation5 + $0x78] sm:$0xff]
    %v72 = vld [vmem:[#allocation7] sm:$0xff]
    %v73 = vld [vmem:[#allocation7 + $0x8] sm:$0xff]
    %v74 = vld [vmem:[#allocation7 + $0x10] sm:$0xff]
    %v75 = vld [vmem:[#allocation2] sm:$0xff]
    %v76 = vld [vmem:[#allocation2 + $0x8] sm:$0xff]
    %v77 = vlaneseq
    %v78 = vshrl.u32 %v77, 7
    %v79 = vsub.s32 0, %v78
    %v80 = vrot.slane %v72, %v79
    %v81 = vlaneseq
    %v82 = vshrl.u32 %v81, 7
    %v83 = vsub.s32 0, %v82
    %v84 = vrot.slane %v73, %v83
    %vm85 = vcmask 261120
    %v87 = vsel %vm85, %v75, 0
    %v90 = vsel %vm85, %v76, 0
    %92 = vmatprep.subr.mxu0 %v57
    %93 = vmatpush1.msra.mxu0 %v56
    %94 = vmatprep.subr.mxu0 %v59
    %95 = vmatpush1.msra.mxu0 %v58
    %96 = vmatprep.subr.mxu0 %v61
    %97 = vmatpush1.msra.mxu0 %v60
    %98 = vmatprep.subr.mxu0 %v63
    %99 = vmatpush1.msra.mxu0 %v62
    %100 = vmatprep.subr.mxu0 0.0
    %101 = vmatpush1.msra.mxu0 0.0
    %102 = vmatprep.subr.mxu0 0.0
    %103 = vmatpush1.msra.mxu0 0.0
    %104 = vmatprep.subr.mxu0 0.0
    %105 = vmatpush1.msra.mxu0 0.0
    %106 = vmatprep.subr.mxu0 0.0
    %107 = vmatpush1.msra.mxu0 0.0
    %108 = vmatprep.subr.mxu0 0.0
    %109 = vmatpush1.msra.mxu0 0.0
    %110 = vmatprep.subr.mxu0 0.0
    %111 = vmatpush1.msra.mxu0 0.0
    %112 = vmatprep.subr.mxu0 0.0
    %113 = vmatpush1.msra.mxu0 0.0
    %114 = vmatprep.subr.mxu0 0.0
    %115 = vmatpush1.msra.mxu0 0.0
    %116 = vmatprep.subr.mxu0 0.0
    %117 = vmatpush1.msra.mxu0 0.0
    %118 = vmatprep.subr.mxu0 0.0
    %119 = vmatpush1.msra.mxu0 0.0
    %120 = vmatprep.subr.mxu0 0.0
    %121 = vmatpush1.msra.mxu0 0.0
    %122 = vmatprep.subr.mxu0 0.0
    %123 = vmatpush1.msra.mxu0 0.0
    %124 = vmatprep.subr.mxu0 0.0
    %125 = vmatpush1.msra.mxu0 0.0
    %126 = vmatprep.subr.mxu0 0.0
    %127 = vmatpush1.msra.mxu0 0.0
    %128 = vmatprep.subr.mxu0 0.0
    %129 = vmatpush1.msra.mxu0 0.0
    %130 = vmatprep.subr.mxu0 0.0
    %131 = vmatpush1.msra.mxu0 0.0
    %132 = vmatprep.subr.mxu0 0.0
    %133 = vmatpush1.msra.mxu0 0.0
    %134 = vmatprep.subr.mxu0 0.0
    %135 = vmatpush1.msra.mxu0 0.0
    %136 = vmatprep.subr.mxu0 0.0
    %137 = vmatpush1.msra.mxu0 0.0
    %138 = vmatprep.subr.mxu0 0.0
    %139 = vmatpush1.msra.mxu0 0.0
    %140 = vmatprep.subr.mxu0 0.0
    %141 = vmatpush1.msra.mxu0 0.0
    %142 = vmatprep.subr.mxu0 0.0
    %143 = vmatpush1.msra.mxu0 0.0
    %144 = vmatprep.subr.mxu0 0.0
    %145 = vmatpush1.msra.mxu0 0.0
    %146 = vmatprep.subr.mxu0 0.0
    %147 = vmatpush1.msra.mxu0 0.0
    %148 = vmatprep.subr.mxu0 0.0
    %149 = vmatpush1.msra.mxu0 0.0
    %150 = vmatprep.subr.mxu0 0.0
    %151 = vmatpush1.msra.mxu0 0.0
    %152 = vmatprep.subr.mxu0 0.0
    %153 = vmatpush1.msra.mxu0 0.0
    %154 = vmatprep.subr.mxu0 0.0
    %155 = vmatpush1.msra.mxu0 0.0
    %156 = vmatprep.mubr.f32.mxu0 0.0
    %157 = vmatmul.mubr.f32.gmra.mrb[0].mxu0 %v87
    %v158 = vpop.f32.mrb[0].mxu0
    %v159 = vadd.f32 %v80, %v158
    %v160 = vpop.f32.mrb[0].mxu0
    %v161 = vadd.f32 %v84, %v160
    %162 = vmatprep.mubr.f32.mxu0 0.0
    %163 = vmatmul.mubr.f32.gmra.mrb[0].mxu0 %v90
    %v164 = vpop.f32.mrb[0].mxu0
    %v165 = vadd.f32 %v80, %v164
    %v166 = vpop.f32.mrb[0].mxu0
    %v167 = vadd.f32 %v84, %v166
    %168 = vdwg.mxu0
    %v169 = vlaneseq
    %v170 = vand.u32 %v169, 127
    %vm171 = vcmp.lt.s32.totalorder %v170, 4
    %vm172 = vcmp.lt.s32.totalorder %v170, 32
    %v174 = vsel %vm85, 0.0, 0
    %176 = vmatprep.subr.mxu0 %v65
    %177 = vmatpush1.msra.mxu0 %v64
    %178 = vmatprep.subr.mxu0 %v67
    %179 = vmatpush1.msra.mxu0 %v66
    %180 = vmatprep.subr.mxu0 %v69
    %181 = vmatpush1.msra.mxu0 %v68
    %182 = vmatprep.subr.mxu0 %v71
    %183 = vmatpush1.msra.mxu0 %v70
    %184 = vmatprep.subr.mxu0 0.0
    %185 = vmatpush1.msra.mxu0 0.0
    %186 = vmatprep.subr.mxu0 0.0
    %187 = vmatpush1.msra.mxu0 0.0
    %188 = vmatprep.subr.mxu0 0.0
    %189 = vmatpush1.msra.mxu0 0.0
    %190 = vmatprep.subr.mxu0 0.0
    %191 = vmatpush1.msra.mxu0 0.0
    %192 = vmatprep.subr.mxu0 0.0
    %193 = vmatpush1.msra.mxu0 0.0
    %194 = vmatprep.subr.mxu0 0.0
    %195 = vmatpush1.msra.mxu0 0.0
    %196 = vmatprep.subr.mxu0 0.0
    %197 = vmatpush1.msra.mxu0 0.0
    %198 = vmatprep.subr.mxu0 0.0
    %199 = vmatpush1.msra.mxu0 0.0
    %200 = vmatprep.subr.mxu0 0.0
    %201 = vmatpush1.msra.mxu0 0.0
    %202 = vmatprep.subr.mxu0 0.0
    %203 = vmatpush1.msra.mxu0 0.0
    %204 = vmatprep.subr.mxu0 0.0
    %205 = vmatpush1.msra.mxu0 0.0
    %206 = vmatprep.subr.mxu0 0.0
    %207 = vmatpush1.msra.mxu0 0.0
    %208 = vmatprep.subr.mxu0 0.0
    %209 = vmatpush1.msra.mxu0 0.0
    %210 = vmatprep.subr.mxu0 0.0
    %211 = vmatpush1.msra.mxu0 0.0
    %212 = vmatprep.subr.mxu0 0.0
    %213 = vmatpush1.msra.mxu0 0.0
    %214 = vmatprep.subr.mxu0 0.0
    %215 = vmatpush1.msra.mxu0 0.0
    %216 = vmatprep.subr.mxu0 0.0
    %217 = vmatpush1.msra.mxu0 0.0
    %218 = vmatprep.subr.mxu0 0.0
    %219 = vmatpush1.msra.mxu0 0.0
    %220 = vmatprep.subr.mxu0 0.0
    %221 = vmatpush1.msra.mxu0 0.0
    %222 = vmatprep.subr.mxu0 0.0
    %223 = vmatpush1.msra.mxu0 0.0
    %224 = vmatprep.subr.mxu0 0.0
    %225 = vmatpush1.msra.mxu0 0.0
    %226 = vmatprep.subr.mxu0 0.0
    %227 = vmatpush1.msra.mxu0 0.0
    %228 = vmatprep.subr.mxu0 0.0
    %229 = vmatpush1.msra.mxu0 0.0
    %230 = vmatprep.subr.mxu0 0.0
    %231 = vmatpush1.msra.mxu0 0.0
    %232 = vmatprep.subr.mxu0 0.0
    %233 = vmatpush1.msra.mxu0 0.0
    %234 = vmatprep.subr.mxu0 0.0
    %235 = vmatpush1.msra.mxu0 0.0
    %236 = vmatprep.subr.mxu0 0.0
    %237 = vmatpush1.msra.mxu0 0.0
    %238 = vmatprep.subr.mxu0 0.0
    %239 = vmatpush1.msra.mxu0 0.0
    %240 = vmatprep.mubr.f32.mxu0 0.0
    %241 = vmatmul.mubr.f32.gmra.mrb[0].mxu0 %v174
    %v242 = vpop.f32.mrb[0].mxu0
    %v243 = vadd.f32 0.0, %v242
    %v244 = vpop.f32.mrb[0].mxu0
    %v245 = vadd.f32 0.0, %v244
    %246 = vdwg.mxu0
    %v247 = vadd.f32 %v159, %v243
    %v248 = vadd.f32 %v161, %v245
    %vm249 = vcmask 25600
    %v250 = vsel %vm249, %v248, -inf
    %251 = vmax.xlane.f32.xlu0 %v250
    %v252 = vpop.xlane.xlu0 %251
    %vm253 = vcmask 58400
    %v254 = vsel %vm253, %v248, -inf
    %255 = vmax.xlane.f32.xlu0 %v254
    %v256 = vpop.xlane.xlu0 %255
    %v257 = vsel %vm171, %v252, %v256
    %v258 = vsub.f32 %v248, %v257
    %v259 = vmul.f32 %v258, 1.442695
    %v260 = vpow.pop %v259
    %vm261 = vcmask 64512
    %v263 = vsel %vm261, %v260, 0
    %265 = vmatprep.subr.mxu0 0.0
    %266 = vmatpush1.msra.mxu0 %v74
    %267 = vmatprep.subr.mxu0 0.0
    %268 = vmatpush1.msra.mxu0 0.0
    %269 = vmatprep.subr.mxu0 0.0
    %270 = vmatpush1.msra.mxu0 0.0
    %271 = vmatprep.subr.mxu0 0.0
    %272 = vmatpush1.msra.mxu0 0.0
    %273 = vmatprep.subr.mxu0 0.0
    %274 = vmatpush1.msra.mxu0 0.0
    %275 = vmatprep.subr.mxu0 0.0
    %276 = vmatpush1.msra.mxu0 0.0
    %277 = vmatprep.subr.mxu0 0.0
    %278 = vmatpush1.msra.mxu0 0.0
    %279 = vmatprep.subr.mxu0 0.0
    %280 = vmatpush1.msra.mxu0 0.0
    %281 = vmatprep.subr.mxu0 0.0
    %282 = vmatpush1.msra.mxu0 0.0
    %283 = vmatprep.subr.mxu0 0.0
    %284 = vmatpush1.msra.mxu0 0.0
    %285 = vmatprep.subr.mxu0 0.0
    %286 = vmatpush1.msra.mxu0 0.0
    %287 = vmatprep.subr.mxu0 0.0
    %288 = vmatpush1.msra.mxu0 0.0
    %289 = vmatprep.subr.mxu0 0.0
    %290 = vmatpush1.msra.mxu0 0.0
    %291 = vmatprep.subr.mxu0 0.0
    %292 = vmatpush1.msra.mxu0 0.0
    %293 = vmatprep.subr.mxu0 0.0
    %294 = vmatpush1.msra.mxu0 0.0
    %295 = vmatprep.subr.mxu0 0.0
    %296 = vmatpush1.msra.mxu0 0.0
    %297 = vmatprep.subr.mxu0 0.0
    %298 = vmatpush1.msra.mxu0 0.0
    %299 = vmatprep.subr.mxu0 0.0
    %300 = vmatpush1.msra.mxu0 0.0
    %301 = vmatprep.subr.mxu0 0.0
    %302 = vmatpush1.msra.mxu0 0.0
    %303 = vmatprep.subr.mxu0 0.0
    %304 = vmatpush1.msra.mxu0 0.0
    %305 = vmatprep.subr.mxu0 0.0
    %306 = vmatpush1.msra.mxu0 0.0
    %307 = vmatprep.subr.mxu0 0.0
    %308 = vmatpush1.msra.mxu0 0.0
    %309 = vmatprep.subr.mxu0 0.0
    %310 = vmatpush1.msra.mxu0 0.0
    %311 = vmatprep.subr.mxu0 0.0
    %312 = vmatpush1.msra.mxu0 0.0
    %313 = vmatprep.subr.mxu0 0.0
    %314 = vmatpush1.msra.mxu0 0.0
    %315 = vmatprep.subr.mxu0 0.0
    %316 = vmatpush1.msra.mxu0 0.0
    %317 = vmatprep.subr.mxu0 0.0
    %318 = vmatpush1.msra.mxu0 0.0
    %319 = vmatprep.subr.mxu0 0.0
    %320 = vmatpush1.msra.mxu0 0.0
    %321 = vmatprep.subr.mxu0 0.0
    %322 = vmatpush1.msra.mxu0 0.0
    %323 = vmatprep.subr.mxu0 0.0
    %324 = vmatpush1.msra.mxu0 0.0
    %325 = vmatprep.subr.mxu0 0.0
    %326 = vmatpush1.msra.mxu0 0.0
    %327 = vmatprep.subr.mxu0 0.0
    %328 = vmatpush1.msra.mxu0 0.0
    %329 = vmatprep.mubr.f32.mxu0 0.0
    %330 = vmatmul.mubr.f32.gmra.mrb[0].mxu0 %v263
    %v331 = vpop.f32.mrb[0].mxu0
    %v332 = vadd.f32 0.0, %v331
    %v333 = vpop.f32.mrb[0].mxu0
    %334 = vdwg.mxu0
    %336 = vset.pattern.permute.xlu0 31
    %337 = vperm.xlu0 %336, %v332
    %v338 = vpop.permute.xlu0 %337
    %340 = vset.pattern.permute.xlu0 63
    %341 = vperm.xlu0 %340, %v332
    %v342 = vpop.permute.xlu0 %341
    %v344 = vsel %vm172, %v338, %v342
    %v345 = vrcp.pop %v344
    %v346 = vmul.f32 %v332, %v345
    %v347 = vsub.f32 1.0, %v346
    %v348 = vxor.u32 %v247, 2147483648
    %v349 = vmul.f32 %v348, 1.442695
    %v350 = vpow.pop %v349
    %v351 = vadd.f32 %v350, 1.0
    %v352 = vrcp.pop %v351
    %v353 = vmul.f32 1.0, %v352
    %v354 = vtanh.pop %v247
    %356 = vrot.lane.b32.xlu0 %v347, 96
    %v357 = vpop.permute.xlu0 %356
    %v359 = vmul.f32 %v346, %v357
    %361 = vrot.lane.b32.xlu0 %v359, 64
    %v362 = vpop.permute.xlu0 %361
    %v364 = vmul.f32 %v353, %v362
    %v365 = vsub.f32 %v346, %v359
    %367 = vrot.lane.b32.xlu0 %v365, 64
    %v368 = vpop.permute.xlu0 %367
    %v370 = vadd.f32 %v364, %v368
    %371 = vrot.lane.b32.xlu0 %v359, 32
    %v372 = vpop.permute.xlu0 %371
    %v374 = vmul.f32 %v353, %v372
    %v375 = vsub.f32 %v347, %v372
    %v376 = vadd.f32 %v374, %v375
    %v377 = vmul.f32 %v370, 0.0
    %379 = vrot.lane.b32.xlu0 %v354, 64
    %v380 = vpop.permute.xlu0 %379
    %v382 = vmul.f32 %v376, %v380
    %384 = vrot.lane.b32.xlu0 %v382, 32
    %v385 = vpop.permute.xlu0 %384
    %v387 = vadd.f32 %v377, %v385
    %v388 = vtanh.pop %v387
    %390 = vrot.lane.b32.xlu0 %v388, 64
    %v391 = vpop.permute.xlu0 %390
    %v393 = vmul.f32 %v353, %v391
    %vm394 = vcmask 254976
    %395 = vst.msk [vmem:[#allocation8] sm:$0x3] %vm394, %v393
    %v397 = vsel %vm85, %v393, 0
    %399 = vmatprep.subr.mxu0 %v65
    %400 = vmatpush1.msra.mxu0 %v64
    %401 = vmatprep.subr.mxu0 %v67
    %402 = vmatpush1.msra.mxu0 %v66
    %403 = vmatprep.subr.mxu0 %v69
    %404 = vmatpush1.msra.mxu0 %v68
    %405 = vmatprep.subr.mxu0 %v71
    %406 = vmatpush1.msra.mxu0 %v70
    %407 = vmatprep.subr.mxu0 0.0
    %408 = vmatpush1.msra.mxu0 0.0
    %409 = vmatprep.subr.mxu0 0.0
    %410 = vmatpush1.msra.mxu0 0.0
    %411 = vmatprep.subr.mxu0 0.0
    %412 = vmatpush1.msra.mxu0 0.0
    %413 = vmatprep.subr.mxu0 0.0
    %414 = vmatpush1.msra.mxu0 0.0
    %415 = vmatprep.subr.mxu0 0.0
    %416 = vmatpush1.msra.mxu0 0.0
    %417 = vmatprep.subr.mxu0 0.0
    %418 = vmatpush1.msra.mxu0 0.0
    %419 = vmatprep.subr.mxu0 0.0
    %420 = vmatpush1.msra.mxu0 0.0
    %421 = vmatprep.subr.mxu0 0.0
    %422 = vmatpush1.msra.mxu0 0.0
    %423 = vmatprep.subr.mxu0 0.0
    %424 = vmatpush1.msra.mxu0 0.0
    %425 = vmatprep.subr.mxu0 0.0
    %426 = vmatpush1.msra.mxu0 0.0
    %427 = vmatprep.subr.mxu0 0.0
    %428 = vmatpush1.msra.mxu0 0.0
    %429 = vmatprep.subr.mxu0 0.0
    %430 = vmatpush1.msra.mxu0 0.0
    %431 = vmatprep.subr.mxu0 0.0
    %432 = vmatpush1.msra.mxu0 0.0
    %433 = vmatprep.subr.mxu0 0.0
    %434 = vmatpush1.msra.mxu0 0.0
    %435 = vmatprep.subr.mxu0 0.0
    %436 = vmatpush1.msra.mxu0 0.0
    %437 = vmatprep.subr.mxu0 0.0
    %438 = vmatpush1.msra.mxu0 0.0
    %439 = vmatprep.subr.mxu0 0.0
    %440 = vmatpush1.msra.mxu0 0.0
    %441 = vmatprep.subr.mxu0 0.0
    %442 = vmatpush1.msra.mxu0 0.0
    %443 = vmatprep.subr.mxu0 0.0
    %444 = vmatpush1.msra.mxu0 0.0
    %445 = vmatprep.subr.mxu0 0.0
    %446 = vmatpush1.msra.mxu0 0.0
    %447 = vmatprep.subr.mxu0 0.0
    %448 = vmatpush1.msra.mxu0 0.0
    %449 = vmatprep.subr.mxu0 0.0
    %450 = vmatpush1.msra.mxu0 0.0
    %451 = vmatprep.subr.mxu0 0.0
    %452 = vmatpush1.msra.mxu0 0.0
    %453 = vmatprep.subr.mxu0 0.0
    %454 = vmatpush1.msra.mxu0 0.0
    %455 = vmatprep.subr.mxu0 0.0
    %456 = vmatpush1.msra.mxu0 0.0
    %457 = vmatprep.subr.mxu0 0.0
    %458 = vmatpush1.msra.mxu0 0.0
    %459 = vmatprep.subr.mxu0 0.0
    %460 = vmatpush1.msra.mxu0 0.0
    %461 = vmatprep.subr.mxu0 0.0
    %462 = vmatpush1.msra.mxu0 0.0
    %463 = vmatprep.mubr.f32.mxu0 0.0
    %464 = vmatmul.mubr.f32.gmra.mrb[0].mxu0 %v397
    %v465 = vpop.f32.mrb[0].mxu0
    %v466 = vadd.f32 0.0, %v465
    %v467 = vpop.f32.mrb[0].mxu0
    %v468 = vadd.f32 0.0, %v467
    %469 = vdwg.mxu0
    %v472 = vrot.slane %v466, 6
    %v473 = vrot.slane %v468, 6
    %v476 = vadd.f32 %v159, %v472
    %v477 = vadd.f32 %v161, %v473
    %vm478 = vcmask 27650
    %v479 = vsel %vm478, %v477, -inf
    %480 = vmax.xlane.f32.xlu0 %v479
    %v481 = vpop.xlane.xlu0 %480
    %vm482 = vcmask 60450
    %v483 = vsel %vm482, %v477, -inf
    %484 = vmax.xlane.f32.xlu0 %v483
    %v485 = vpop.xlane.xlu0 %484
    %v486 = vsel %vm171, %v481, %v485
    %v487 = vsub.f32 %v477, %v486
    %v488 = vmul.f32 %v487, 1.442695
    %v489 = vpow.pop %v488
    %v491 = vrot.slane %v489, 2
    %v492 = vsel %vm261, %v491, 0
    %494 = vmatprep.subr.mxu0 0.0
    %495 = vmatpush1.msra.mxu0 %v74
    %496 = vmatprep.subr.mxu0 0.0
    %497 = vmatpush1.msra.mxu0 0.0
    %498 = vmatprep.subr.mxu0 0.0
    %499 = vmatpush1.msra.mxu0 0.0
    %500 = vmatprep.subr.mxu0 0.0
    %501 = vmatpush1.msra.mxu0 0.0
    %502 = vmatprep.subr.mxu0 0.0
    %503 = vmatpush1.msra.mxu0 0.0
    %504 = vmatprep.subr.mxu0 0.0
    %505 = vmatpush1.msra.mxu0 0.0
    %506 = vmatprep.subr.mxu0 0.0
    %507 = vmatpush1.msra.mxu0 0.0
    %508 = vmatprep.subr.mxu0 0.0
    %509 = vmatpush1.msra.mxu0 0.0
    %510 = vmatprep.subr.mxu0 0.0
    %511 = vmatpush1.msra.mxu0 0.0
    %512 = vmatprep.subr.mxu0 0.0
    %513 = vmatpush1.msra.mxu0 0.0
    %514 = vmatprep.subr.mxu0 0.0
    %515 = vmatpush1.msra.mxu0 0.0
    %516 = vmatprep.subr.mxu0 0.0
    %517 = vmatpush1.msra.mxu0 0.0
    %518 = vmatprep.subr.mxu0 0.0
    %519 = vmatpush1.msra.mxu0 0.0
    %520 = vmatprep.subr.mxu0 0.0
    %521 = vmatpush1.msra.mxu0 0.0
    %522 = vmatprep.subr.mxu0 0.0
    %523 = vmatpush1.msra.mxu0 0.0
    %524 = vmatprep.subr.mxu0 0.0
    %525 = vmatpush1.msra.mxu0 0.0
    %526 = vmatprep.subr.mxu0 0.0
    %527 = vmatpush1.msra.mxu0 0.0
    %528 = vmatprep.subr.mxu0 0.0
    %529 = vmatpush1.msra.mxu0 0.0
    %530 = vmatprep.subr.mxu0 0.0
    %531 = vmatpush1.msra.mxu0 0.0
    %532 = vmatprep.subr.mxu0 0.0
    %533 = vmatpush1.msra.mxu0 0.0
    %534 = vmatprep.subr.mxu0 0.0
    %535 = vmatpush1.msra.mxu0 0.0
    %536 = vmatprep.subr.mxu0 0.0
    %537 = vmatpush1.msra.mxu0 0.0
    %538 = vmatprep.subr.mxu0 0.0
    %539 = vmatpush1.msra.mxu0 0.0
    %540 = vmatprep.subr.mxu0 0.0
    %541 = vmatpush1.msra.mxu0 0.0
    %542 = vmatprep.subr.mxu0 0.0
    %543 = vmatpush1.msra.mxu0 0.0
    %544 = vmatprep.subr.mxu0 0.0
    %545 = vmatpush1.msra.mxu0 0.0
    %546 = vmatprep.subr.mxu0 0.0
    %547 = vmatpush1.msra.mxu0 0.0
    %548 = vmatprep.subr.mxu0 0.0
    %549 = vmatpush1.msra.mxu0 0.0
    %550 = vmatprep.subr.mxu0 0.0
    %551 = vmatpush1.msra.mxu0 0.0
    %552 = vmatprep.subr.mxu0 0.0
    %553 = vmatpush1.msra.mxu0 0.0
    %554 = vmatprep.subr.mxu0 0.0
    %555 = vmatpush1.msra.mxu0 0.0
    %556 = vmatprep.subr.mxu0 0.0
    %557 = vmatpush1.msra.mxu0 0.0
    %558 = vmatprep.mubr.f32.mxu0 0.0
    %559 = vmatmul.mubr.f32.gmra.mrb[0].mxu0 %v492
    %v560 = vpop.f32.mrb[0].mxu0
    %v561 = vadd.f32 0.0, %v560
    %v562 = vpop.f32.mrb[0].mxu0
    %563 = vdwg.mxu0
    %565 = vset.pattern.permute.xlu0 31
    %566 = vperm.xlu0 %565, %v561
    %v567 = vpop.permute.xlu0 %566
    %569 = vset.pattern.permute.xlu0 63
    %570 = vperm.xlu0 %569, %v561
    %v571 = vpop.permute.xlu0 %570
    %v573 = vsel %vm172, %v567, %v571
    %v574 = vrcp.pop %v573
    %v575 = vmul.f32 %v561, %v574
    %v576 = vsub.f32 1.0, %v575
    %v577 = vxor.u32 %v476, 2147483648
    %v578 = vmul.f32 %v577, 1.442695
    %v579 = vpow.pop %v578
    %v580 = vadd.f32 %v579, 1.0
    %v581 = vrcp.pop %v580
    %v582 = vmul.f32 1.0, %v581
    %v583 = vtanh.pop %v476
    %585 = vrot.lane.b32.xlu0 %v576, 96
    %v586 = vpop.permute.xlu0 %585
    %v588 = vmul.f32 %v575, %v586
    %v590 = vrot.slane %v588, 6
    %591 = vrot.lane.b32.xlu0 %v590, 64
    %v592 = vpop.permute.xlu0 %591
    %v594 = vmul.f32 %v582, %v592
    %v595 = vsub.f32 %v575, %v588
    %v597 = vrot.slane %v595, 6
    %598 = vrot.lane.b32.xlu0 %v597, 64
    %v599 = vpop.permute.xlu0 %598
    %v601 = vadd.f32 %v594, %v599
    %602 = vrot.lane.b32.xlu0 %v590, 32
    %v603 = vpop.permute.xlu0 %602
    %v605 = vmul.f32 %v582, %v603
    %606 = vrot.lane.b32.xlu0 %v588, 32
    %v607 = vpop.permute.xlu0 %606
    %v609 = vsub.f32 %v576, %v607
    %v611 = vrot.slane %v609, 6
    %v613 = vadd.f32 %v605, %v611
    %v615 = vrot.slane %v387, 6
    %v617 = vmul.f32 %v601, %v615
    %619 = vrot.lane.b32.xlu0 %v583, 64
    %v620 = vpop.permute.xlu0 %619
    %v622 = vmul.f32 %v613, %v620
    %624 = vrot.lane.b32.xlu0 %v622, 32
    %v625 = vpop.permute.xlu0 %624
    %v627 = vadd.f32 %v617, %v625
    %v628 = vtanh.pop %v627
    %630 = vrot.lane.b32.xlu0 %v628, 64
    %v631 = vpop.permute.xlu0 %630
    %v633 = vmul.f32 %v582, %v631
    %v636 = vunpack.c.l.s4 1983009808
    %v637 = vunpack.c.0.s8 %v636
    %v638 = vlaneseq
    %v639 = vshrl.u32 %v638, 7
    %v640 = vsub.s32 %v637, %v639
    %v641 = vrot.slane %v633, %v640
    %v642 = vcombine.high %v641, %v641
    %643 = vrot.lane.b32.xlu0 %v642, 32
    %v644 = vpop.permute.xlu0 %643
    %vm646 = vcmask 517376
    %647 = vst.msk [vmem:[#allocation8] sm:$0x3] %vm646, %v644
    %v648 = vrot.slane %v633, 2
    %v649 = vsel %vm85, %v648, 0
    %651 = vmatprep.subr.mxu0 %v65
    %652 = vmatpush1.msra.mxu0 %v64
    %653 = vmatprep.subr.mxu0 %v67
    %654 = vmatpush1.msra.mxu0 %v66
    %655 = vmatprep.subr.mxu0 %v69
    %656 = vmatpush1.msra.mxu0 %v68
    %657 = vmatprep.subr.mxu0 %v71
    %658 = vmatpush1.msra.mxu0 %v70
    %659 = vmatprep.subr.mxu0 0.0
    %660 = vmatpush1.msra.mxu0 0.0
    %661 = vmatprep.subr.mxu0 0.0
    %662 = vmatpush1.msra.mxu0 0.0
    %663 = vmatprep.subr.mxu0 0.0
    %664 = vmatpush1.msra.mxu0 0.0
    %665 = vmatprep.subr.mxu0 0.0
    %666 = vmatpush1.msra.mxu0 0.0
    %667 = vmatprep.subr.mxu0 0.0
    %668 = vmatpush1.msra.mxu0 0.0
    %669 = vmatprep.subr.mxu0 0.0
    %670 = vmatpush1.msra.mxu0 0.0
    %671 = vmatprep.subr.mxu0 0.0
    %672 = vmatpush1.msra.mxu0 0.0
    %673 = vmatprep.subr.mxu0 0.0
    %674 = vmatpush1.msra.mxu0 0.0
    %675 = vmatprep.subr.mxu0 0.0
    %676 = vmatpush1.msra.mxu0 0.0
    %677 = vmatprep.subr.mxu0 0.0
    %678 = vmatpush1.msra.mxu0 0.0
    %679 = vmatprep.subr.mxu0 0.0
    %680 = vmatpush1.msra.mxu0 0.0
    %681 = vmatprep.subr.mxu0 0.0
    %682 = vmatpush1.msra.mxu0 0.0
    %683 = vmatprep.subr.mxu0 0.0
    %684 = vmatpush1.msra.mxu0 0.0
    %685 = vmatprep.subr.mxu0 0.0
    %686 = vmatpush1.msra.mxu0 0.0
    %687 = vmatprep.subr.mxu0 0.0
    %688 = vmatpush1.msra.mxu0 0.0
    %689 = vmatprep.subr.mxu0 0.0
    %690 = vmatpush1.msra.mxu0 0.0
    %691 = vmatprep.subr.mxu0 0.0
    %692 = vmatpush1.msra.mxu0 0.0
    %693 = vmatprep.subr.mxu0 0.0
    %694 = vmatpush1.msra.mxu0 0.0
    %695 = vmatprep.subr.mxu0 0.0
    %696 = vmatpush1.msra.mxu0 0.0
    %697 = vmatprep.subr.mxu0 0.0
    %698 = vmatpush1.msra.mxu0 0.0
    %699 = vmatprep.subr.mxu0 0.0
    %700 = vmatpush1.msra.mxu0 0.0
    %701 = vmatprep.subr.mxu0 0.0
    %702 = vmatpush1.msra.mxu0 0.0
    %703 = vmatprep.subr.mxu0 0.0
    %704 = vmatpush1.msra.mxu0 0.0
    %705 = vmatprep.subr.mxu0 0.0
    %706 = vmatpush1.msra.mxu0 0.0
    %707 = vmatprep.subr.mxu0 0.0
    %708 = vmatpush1.msra.mxu0 0.0
    %709 = vmatprep.subr.mxu0 0.0
    %710 = vmatpush1.msra.mxu0 0.0
    %711 = vmatprep.subr.mxu0 0.0
    %712 = vmatpush1.msra.mxu0 0.0
    %713 = vmatprep.subr.mxu0 0.0
    %714 = vmatpush1.msra.mxu0 0.0
    %715 = vmatprep.mubr.f32.mxu0 0.0
    %716 = vmatmul.mubr.f32.gmra.mrb[0].mxu0 %v649
    %v717 = vpop.f32.mrb[0].mxu0
    %v718 = vadd.f32 0.0, %v717
    %v719 = vpop.f32.mrb[0].mxu0
    %v720 = vadd.f32 0.0, %v719
    %721 = vdwg.mxu0
    %v724 = vrot.slane %v718, 4
    %v725 = vrot.slane %v720, 4
    %v728 = vadd.f32 %v159, %v724
    %v729 = vadd.f32 %v161, %v725
    %vm730 = vcmask 29700
    %v731 = vsel %vm730, %v729, -inf
    %732 = vmax.xlane.f32.xlu0 %v731
    %v733 = vpop.xlane.xlu0 %732
    %vm734 = vcmask 62500
    %v735 = vsel %vm734, %v729, -inf
    %736 = vmax.xlane.f32.xlu0 %v735
    %v737 = vpop.xlane.xlu0 %736
    %v738 = vsel %vm171, %v733, %v737
    %v739 = vsub.f32 %v729, %v738
    %v740 = vmul.f32 %v739, 1.442695
    %v741 = vpow.pop %v740
    %v743 = vrot.slane %v741, 4
    %v744 = vsel %vm261, %v743, 0
    %746 = vmatprep.subr.mxu0 0.0
    %747 = vmatpush1.msra.mxu0 %v74
    %748 = vmatprep.subr.mxu0 0.0
    %749 = vmatpush1.msra.mxu0 0.0
    %750 = vmatprep.subr.mxu0 0.0
    %751 = vmatpush1.msra.mxu0 0.0
    %752 = vmatprep.subr.mxu0 0.0
    %753 = vmatpush1.msra.mxu0 0.0
    %754 = vmatprep.subr.mxu0 0.0
    %755 = vmatpush1.msra.mxu0 0.0
    %756 = vmatprep.subr.mxu0 0.0
    %757 = vmatpush1.msra.mxu0 0.0
    %758 = vmatprep.subr.mxu0 0.0
    %759 = vmatpush1.msra.mxu0 0.0
    %760 = vmatprep.subr.mxu0 0.0
    %761 = vmatpush1.msra.mxu0 0.0
    %762 = vmatprep.subr.mxu0 0.0
    %763 = vmatpush1.msra.mxu0 0.0
    %764 = vmatprep.subr.mxu0 0.0
    %765 = vmatpush1.msra.mxu0 0.0
    %766 = vmatprep.subr.mxu0 0.0
    %767 = vmatpush1.msra.mxu0 0.0
    %768 = vmatprep.subr.mxu0 0.0
    %769 = vmatpush1.msra.mxu0 0.0
    %770 = vmatprep.subr.mxu0 0.0
    %771 = vmatpush1.msra.mxu0 0.0
    %772 = vmatprep.subr.mxu0 0.0
    %773 = vmatpush1.msra.mxu0 0.0
    %774 = vmatprep.subr.mxu0 0.0
    %775 = vmatpush1.msra.mxu0 0.0
    %776 = vmatprep.subr.mxu0 0.0
    %777 = vmatpush1.msra.mxu0 0.0
    %778 = vmatprep.subr.mxu0 0.0
    %779 = vmatpush1.msra.mxu0 0.0
    %780 = vmatprep.subr.mxu0 0.0
    %781 = vmatpush1.msra.mxu0 0.0
    %782 = vmatprep.subr.mxu0 0.0
    %783 = vmatpush1.msra.mxu0 0.0
    %784 = vmatprep.subr.mxu0 0.0
    %785 = vmatpush1.msra.mxu0 0.0
    %786 = vmatprep.subr.mxu0 0.0
    %787 = vmatpush1.msra.mxu0 0.0
    %788 = vmatprep.subr.mxu0 0.0
    %789 = vmatpush1.msra.mxu0 0.0
    %790 = vmatprep.subr.mxu0 0.0
    %791 = vmatpush1.msra.mxu0 0.0
    %792 = vmatprep.subr.mxu0 0.0
    %793 = vmatpush1.msra.mxu0 0.0
    %794 = vmatprep.subr.mxu0 0.0
    %795 = vmatpush1.msra.mxu0 0.0
    %796 = vmatprep.subr.mxu0 0.0
    %797 = vmatpush1.msra.mxu0 0.0
    %798 = vmatprep.subr.mxu0 0.0
    %799 = vmatpush1.msra.mxu0 0.0
    %800 = vmatprep.subr.mxu0 0.0
    %801 = vmatpush1.msra.mxu0 0.0
    %802 = vmatprep.subr.mxu0 0.0
    %803 = vmatpush1.msra.mxu0 0.0
    %804 = vmatprep.subr.mxu0 0.0
    %805 = vmatpush1.msra.mxu0 0.0
    %806 = vmatprep.subr.mxu0 0.0
    %807 = vmatpush1.msra.mxu0 0.0
    %808 = vmatprep.subr.mxu0 0.0
    %809 = vmatpush1.msra.mxu0 0.0
    %810 = vmatprep.mubr.f32.mxu0 0.0
    %811 = vmatmul.mubr.f32.gmra.mrb[0].mxu0 %v744
    %v812 = vpop.f32.mrb[0].mxu0
    %v813 = vadd.f32 0.0, %v812
    %v814 = vpop.f32.mrb[0].mxu0
    %815 = vdwg.mxu0
    %817 = vset.pattern.permute.xlu0 31
    %818 = vperm.xlu0 %817, %v813
    %v819 = vpop.permute.xlu0 %818
    %821 = vset.pattern.permute.xlu0 63
    %822 = vperm.xlu0 %821, %v813
    %v823 = vpop.permute.xlu0 %822
    %v825 = vsel %vm172, %v819, %v823
    %v826 = vrcp.pop %v825
    %v827 = vmul.f32 %v813, %v826
    %v828 = vsub.f32 1.0, %v827
    %v829 = vxor.u32 %v728, 2147483648
    %v830 = vmul.f32 %v829, 1.442695
    %v831 = vpow.pop %v830
    %v832 = vadd.f32 %v831, 1.0
    %v833 = vrcp.pop %v832
    %v834 = vmul.f32 1.0, %v833
    %v835 = vtanh.pop %v728
    %837 = vrot.lane.b32.xlu0 %v828, 96
    %v838 = vpop.permute.xlu0 %837
    %v840 = vmul.f32 %v827, %v838
    %v842 = vrot.slane %v840, 4
    %843 = vrot.lane.b32.xlu0 %v842, 64
    %v844 = vpop.permute.xlu0 %843
    %v846 = vmul.f32 %v834, %v844
    %v847 = vsub.f32 %v827, %v840
    %v849 = vrot.slane %v847, 4
    %850 = vrot.lane.b32.xlu0 %v849, 64
    %v851 = vpop.permute.xlu0 %850
    %v853 = vadd.f32 %v846, %v851
    %854 = vrot.lane.b32.xlu0 %v842, 32
    %v855 = vpop.permute.xlu0 %854
    %v857 = vmul.f32 %v834, %v855
    %858 = vrot.lane.b32.xlu0 %v840, 32
    %v859 = vpop.permute.xlu0 %858
    %v861 = vsub.f32 %v828, %v859
    %v863 = vrot.slane %v861, 4
    %v865 = vadd.f32 %v857, %v863
    %v867 = vrot.slane %v627, 6
    %v869 = vmul.f32 %v853, %v867
    %871 = vrot.lane.b32.xlu0 %v835, 64
    %v872 = vpop.permute.xlu0 %871
    %v874 = vmul.f32 %v865, %v872
    %876 = vrot.lane.b32.xlu0 %v874, 32
    %v877 = vpop.permute.xlu0 %876
    %v879 = vadd.f32 %v869, %v877
    %v880 = vtanh.pop %v879
    %882 = vrot.lane.b32.xlu0 %v880, 64
    %v883 = vpop.permute.xlu0 %882
    %v885 = vmul.f32 %v834, %v883
    %v887 = vcombine.high %v885, %v885
    %v889 = vunpack.c.l.s4 1983009808
    %v890 = vunpack.c.0.s8 %v889
    %v891 = vlaneseq
    %v892 = vshrl.u32 %v891, 7
    %v893 = vsub.s32 %v890, %v892
    %v894 = vrot.slane %v887, %v893
    %895 = vrot.lane.b32.xlu0 %v894, 64
    %v896 = vpop.permute.xlu0 %895
    %vm898 = vcmask 779776
    %899 = vst.msk [vmem:[#allocation8] sm:$0x3] %vm898, %v896
    %v900 = vrot.slane %v885, 4
    %v901 = vsel %vm85, %v900, 0
    %903 = vmatprep.subr.mxu0 %v65
    %904 = vmatpush1.msra.mxu0 %v64
    %905 = vmatprep.subr.mxu0 %v67
    %906 = vmatpush1.msra.mxu0 %v66
    %907 = vmatprep.subr.mxu0 %v69
    %908 = vmatpush1.msra.mxu0 %v68
    %909 = vmatprep.subr.mxu0 %v71
    %910 = vmatpush1.msra.mxu0 %v70
    %911 = vmatprep.subr.mxu0 0.0
    %912 = vmatpush1.msra.mxu0 0.0
    %913 = vmatprep.subr.mxu0 0.0
    %914 = vmatpush1.msra.mxu0 0.0
    %915 = vmatprep.subr.mxu0 0.0
    %916 = vmatpush1.msra.mxu0 0.0
    %917 = vmatprep.subr.mxu0 0.0
    %918 = vmatpush1.msra.mxu0 0.0
    %919 = vmatprep.subr.mxu0 0.0
    %920 = vmatpush1.msra.mxu0 0.0
    %921 = vmatprep.subr.mxu0 0.0
    %922 = vmatpush1.msra.mxu0 0.0
    %923 = vmatprep.subr.mxu0 0.0
    %924 = vmatpush1.msra.mxu0 0.0
    %925 = vmatprep.subr.mxu0 0.0
    %926 = vmatpush1.msra.mxu0 0.0
    %927 = vmatprep.subr.mxu0 0.0
    %928 = vmatpush1.msra.mxu0 0.0
    %929 = vmatprep.subr.mxu0 0.0
    %930 = vmatpush1.msra.mxu0 0.0
    %931 = vmatprep.subr.mxu0 0.0
    %932 = vmatpush1.msra.mxu0 0.0
    %933 = vmatprep.subr.mxu0 0.0
    %934 = vmatpush1.msra.mxu0 0.0
    %935 = vmatprep.subr.mxu0 0.0
    %936 = vmatpush1.msra.mxu0 0.0
    %937 = vmatprep.subr.mxu0 0.0
    %938 = vmatpush1.msra.mxu0 0.0
    %939 = vmatprep.subr.mxu0 0.0
    %940 = vmatpush1.msra.mxu0 0.0
    %941 = vmatprep.subr.mxu0 0.0
    %942 = vmatpush1.msra.mxu0 0.0
    %943 = vmatprep.subr.mxu0 0.0
    %944 = vmatpush1.msra.mxu0 0.0
    %945 = vmatprep.subr.mxu0 0.0
    %946 = vmatpush1.msra.mxu0 0.0
    %947 = vmatprep.subr.mxu0 0.0
    %948 = vmatpush1.msra.mxu0 0.0
    %949 = vmatprep.subr.mxu0 0.0
    %950 = vmatpush1.msra.mxu0 0.0
    %951 = vmatprep.subr.mxu0 0.0
    %952 = vmatpush1.msra.mxu0 0.0
    %953 = vmatprep.subr.mxu0 0.0
    %954 = vmatpush1.msra.mxu0 0.0
    %955 = vmatprep.subr.mxu0 0.0
    %956 = vmatpush1.msra.mxu0 0.0
    %957 = vmatprep.subr.mxu0 0.0
    %958 = vmatpush1.msra.mxu0 0.0
    %959 = vmatprep.subr.mxu0 0.0
    %960 = vmatpush1.msra.mxu0 0.0
    %961 = vmatprep.subr.mxu0 0.0
    %962 = vmatpush1.msra.mxu0 0.0
    %963 = vmatprep.subr.mxu0 0.0
    %964 = vmatpush1.msra.mxu0 0.0
    %965 = vmatprep.subr.mxu0 0.0
    %966 = vmatpush1.msra.mxu0 0.0
    %967 = vmatprep.mubr.f32.mxu0 0.0
    %968 = vmatmul.mubr.f32.gmra.mrb[0].mxu0 %v901
    %v969 = vpop.f32.mrb[0].mxu0
    %v970 = vadd.f32 0.0, %v969
    %v971 = vpop.f32.mrb[0].mxu0
    %v972 = vadd.f32 0.0, %v971
    %973 = vdwg.mxu0
    %v976 = vrot.slane %v970, 2
    %v977 = vrot.slane %v972, 2
    %v980 = vadd.f32 %v159, %v976
    %v981 = vadd.f32 %v161, %v977
    %vm982 = vcmask 31750
    %v983 = vsel %vm982, %v981, -inf
    %984 = vmax.xlane.f32.xlu0 %v983
    %v985 = vpop.xlane.xlu0 %984
    %vm986 = vcmask 64550
    %v987 = vsel %vm986, %v981, -inf
    %988 = vmax.xlane.f32.xlu0 %v987
    %v989 = vpop.xlane.xlu0 %988
    %v990 = vsel %vm171, %v985, %v989
    %v991 = vsub.f32 %v981, %v990
    %v992 = vmul.f32 %v991, 1.442695
    %v993 = vpow.pop %v992
    %v995 = vrot.slane %v993, 6
    %v996 = vsel %vm261, %v995, 0
    %998 = vmatprep.subr.mxu0 0.0
    %999 = vmatpush1.msra.mxu0 %v74
    %1000 = vmatprep.subr.mxu0 0.0
    %1001 = vmatpush1.msra.mxu0 0.0
    %1002 = vmatprep.subr.mxu0 0.0
    %1003 = vmatpush1.msra.mxu0 0.0
    %1004 = vmatprep.subr.mxu0 0.0
    %1005 = vmatpush1.msra.mxu0 0.0
    %1006 = vmatprep.subr.mxu0 0.0
    %1007 = vmatpush1.msra.mxu0 0.0
    %1008 = vmatprep.subr.mxu0 0.0
    %1009 = vmatpush1.msra.mxu0 0.0
    %1010 = vmatprep.subr.mxu0 0.0
    %1011 = vmatpush1.msra.mxu0 0.0
    %1012 = vmatprep.subr.mxu0 0.0
    %1013 = vmatpush1.msra.mxu0 0.0
    %1014 = vmatprep.subr.mxu0 0.0
    %1015 = vmatpush1.msra.mxu0 0.0
    %1016 = vmatprep.subr.mxu0 0.0
    %1017 = vmatpush1.msra.mxu0 0.0
    %1018 = vmatprep.subr.mxu0 0.0
    %1019 = vmatpush1.msra.mxu0 0.0
    %1020 = vmatprep.subr.mxu0 0.0
    %1021 = vmatpush1.msra.mxu0 0.0
    %1022 = vmatprep.subr.mxu0 0.0
    %1023 = vmatpush1.msra.mxu0 0.0
    %1024 = vmatprep.subr.mxu0 0.0
    %1025 = vmatpush1.msra.mxu0 0.0
    %1026 = vmatprep.subr.mxu0 0.0
    %1027 = vmatpush1.msra.mxu0 0.0
    %1028 = vmatprep.subr.mxu0 0.0
    %1029 = vmatpush1.msra.mxu0 0.0
    %1030 = vmatprep.subr.mxu0 0.0
    %1031 = vmatpush1.msra.mxu0 0.0
    %1032 = vmatprep.subr.mxu0 0.0
    %1033 = vmatpush1.msra.mxu0 0.0
    %1034 = vmatprep.subr.mxu0 0.0
    %1035 = vmatpush1.msra.mxu0 0.0
    %1036 = vmatprep.subr.mxu0 0.0
    %1037 = vmatpush1.msra.mxu0 0.0
    %1038 = vmatprep.subr.mxu0 0.0
    %1039 = vmatpush1.msra.mxu0 0.0
    %1040 = vmatprep.subr.mxu0 0.0
    %1041 = vmatpush1.msra.mxu0 0.0
    %1042 = vmatprep.subr.mxu0 0.0
    %1043 = vmatpush1.msra.mxu0 0.0
    %1044 = vmatprep.subr.mxu0 0.0
    %1045 = vmatpush1.msra.mxu0 0.0
    %1046 = vmatprep.subr.mxu0 0.0
    %1047 = vmatpush1.msra.mxu0 0.0
    %1048 = vmatprep.subr.mxu0 0.0
    %1049 = vmatpush1.msra.mxu0 0.0
    %1050 = vmatprep.subr.mxu0 0.0
    %1051 = vmatpush1.msra.mxu0 0.0
    %1052 = vmatprep.subr.mxu0 0.0
    %1053 = vmatpush1.msra.mxu0 0.0
    %1054 = vmatprep.subr.mxu0 0.0
    %1055 = vmatpush1.msra.mxu0 0.0
    %1056 = vmatprep.subr.mxu0 0.0
    %1057 = vmatpush1.msra.mxu0 0.0
    %1058 = vmatprep.subr.mxu0 0.0
    %1059 = vmatpush1.msra.mxu0 0.0
    %1060 = vmatprep.subr.mxu0 0.0
    %1061 = vmatpush1.msra.mxu0 0.0
    %1062 = vmatprep.mubr.f32.mxu0 0.0
    %1063 = vmatmul.mubr.f32.gmra.mrb[0].mxu0 %v996
    %v1064 = vpop.f32.mrb[0].mxu0
    %v1065 = vadd.f32 0.0, %v1064
    %v1066 = vpop.f32.mrb[0].mxu0
    %1067 = vdwg.mxu0
    %1069 = vset.pattern.permute.xlu0 31
    %1070 = vperm.xlu0 %1069, %v1065
    %v1071 = vpop.permute.xlu0 %1070
    %1073 = vset.pattern.permute.xlu0 63
    %1074 = vperm.xlu0 %1073, %v1065
    %v1075 = vpop.permute.xlu0 %1074
    %v1077 = vsel %vm172, %v1071, %v1075
    %v1078 = vrcp.pop %v1077
    %v1079 = vmul.f32 %v1065, %v1078
    %v1080 = vsub.f32 1.0, %v1079
    %v1081 = vxor.u32 %v980, 2147483648
    %v1082 = vmul.f32 %v1081, 1.442695
    %v1083 = vpow.pop %v1082
    %v1084 = vadd.f32 %v1083, 1.0
    %v1085 = vrcp.pop %v1084
    %v1086 = vmul.f32 1.0, %v1085
    %v1087 = vtanh.pop %v980
    %1089 = vrot.lane.b32.xlu0 %v1080, 96
    %v1090 = vpop.permute.xlu0 %1089
    %v1092 = vmul.f32 %v1079, %v1090
    %v1094 = vrot.slane %v1092, 2
    %1095 = vrot.lane.b32.xlu0 %v1094, 64
    %v1096 = vpop.permute.xlu0 %1095
    %v1098 = vmul.f32 %v1086, %v1096
    %v1099 = vsub.f32 %v1079, %v1092
    %v1101 = vrot.slane %v1099, 2
    %1102 = vrot.lane.b32.xlu0 %v1101, 64
    %v1103 = vpop.permute.xlu0 %1102
    %v1105 = vadd.f32 %v1098, %v1103
    %1106 = vrot.lane.b32.xlu0 %v1094, 32
    %v1107 = vpop.permute.xlu0 %1106
    %v1109 = vmul.f32 %v1086, %v1107
    %1110 = vrot.lane.b32.xlu0 %v1092, 32
    %v1111 = vpop.permute.xlu0 %1110
    %v1113 = vsub.f32 %v1080, %v1111
    %v1115 = vrot.slane %v1113, 2
    %v1117 = vadd.f32 %v1109, %v1115
    %v1119 = vrot.slane %v879, 6
    %v1121 = vmul.f32 %v1105, %v1119
    %1123 = vrot.lane.b32.xlu0 %v1087, 64
    %v1124 = vpop.permute.xlu0 %1123
    %v1126 = vmul.f32 %v1117, %v1124
    %1128 = vrot.lane.b32.xlu0 %v1126, 32
    %v1129 = vpop.permute.xlu0 %1128
    %v1131 = vadd.f32 %v1121, %v1129
    %v1132 = vtanh.pop %v1131
    %1134 = vrot.lane.b32.xlu0 %v1132, 64
    %v1135 = vpop.permute.xlu0 %1134
    %v1137 = vmul.f32 %v1086, %v1135
    %v1139 = vcombine.high %v1137, %v1137
    %v1141 = vunpack.c.l.s4 1983009808
    %v1142 = vunpack.c.0.s8 %v1141
    %v1143 = vlaneseq
    %v1144 = vshrl.u32 %v1143, 7
    %v1145 = vsub.s32 %v1142, %v1144
    %v1146 = vrot.slane %v1139, %v1145
    %v1147 = vcombine.high %v1146, %v1146
    %1148 = vrot.lane.b32.xlu0 %v1147, 96
    %v1149 = vpop.permute.xlu0 %1148
    %vm1151 = vcmask 1042176
    %1152 = vst.msk [vmem:[#allocation8] sm:$0x3] %vm1151, %v1149
    %v1153 = vrot.slane %v1137, 6
    %v1154 = vsel %vm85, %v1153, 0
    %1156 = vmatprep.subr.mxu0 %v65
    %1157 = vmatpush1.msra.mxu0 %v64
    %1158 = vmatprep.subr.mxu0 %v67
    %1159 = vmatpush1.msra.mxu0 %v66
    %1160 = vmatprep.subr.mxu0 %v69
    %1161 = vmatpush1.msra.mxu0 %v68
    %1162 = vmatprep.subr.mxu0 %v71
    %1163 = vmatpush1.msra.mxu0 %v70
    %1164 = vmatprep.subr.mxu0 0.0
    %1165 = vmatpush1.msra.mxu0 0.0
    %1166 = vmatprep.subr.mxu0 0.0
    %1167 = vmatpush1.msra.mxu0 0.0
    %1168 = vmatprep.subr.mxu0 0.0
    %1169 = vmatpush1.msra.mxu0 0.0
    %1170 = vmatprep.subr.mxu0 0.0
    %1171 = vmatpush1.msra.mxu0 0.0
    %1172 = vmatprep.subr.mxu0 0.0
    %1173 = vmatpush1.msra.mxu0 0.0
    %1174 = vmatprep.subr.mxu0 0.0
    %1175 = vmatpush1.msra.mxu0 0.0
    %1176 = vmatprep.subr.mxu0 0.0
    %1177 = vmatpush1.msra.mxu0 0.0
    %1178 = vmatprep.subr.mxu0 0.0
    %1179 = vmatpush1.msra.mxu0 0.0
    %1180 = vmatprep.subr.mxu0 0.0
    %1181 = vmatpush1.msra.mxu0 0.0
    %1182 = vmatprep.subr.mxu0 0.0
    %1183 = vmatpush1.msra.mxu0 0.0
    %1184 = vmatprep.subr.mxu0 0.0
    %1185 = vmatpush1.msra.mxu0 0.0
    %1186 = vmatprep.subr.mxu0 0.0
    %1187 = vmatpush1.msra.mxu0 0.0
    %1188 = vmatprep.subr.mxu0 0.0
    %1189 = vmatpush1.msra.mxu0 0.0
    %1190 = vmatprep.subr.mxu0 0.0
    %1191 = vmatpush1.msra.mxu0 0.0
    %1192 = vmatprep.subr.mxu0 0.0
    %1193 = vmatpush1.msra.mxu0 0.0
    %1194 = vmatprep.subr.mxu0 0.0
    %1195 = vmatpush1.msra.mxu0 0.0
    %1196 = vmatprep.subr.mxu0 0.0
    %1197 = vmatpush1.msra.mxu0 0.0
    %1198 = vmatprep.subr.mxu0 0.0
    %1199 = vmatpush1.msra.mxu0 0.0
    %1200 = vmatprep.subr.mxu0 0.0
    %1201 = vmatpush1.msra.mxu0 0.0
    %1202 = vmatprep.subr.mxu0 0.0
    %1203 = vmatpush1.msra.mxu0 0.0
    %1204 = vmatprep.subr.mxu0 0.0
    %1205 = vmatpush1.msra.mxu0 0.0
    %1206 = vmatprep.subr.mxu0 0.0
    %1207 = vmatpush1.msra.mxu0 0.0
    %1208 = vmatprep.subr.mxu0 0.0
    %1209 = vmatpush1.msra.mxu0 0.0
    %1210 = vmatprep.subr.mxu0 0.0
    %1211 = vmatpush1.msra.mxu0 0.0
    %1212 = vmatprep.subr.mxu0 0.0
    %1213 = vmatpush1.msra.mxu0 0.0
    %1214 = vmatprep.subr.mxu0 0.0
    %1215 = vmatpush1.msra.mxu0 0.0
    %1216 = vmatprep.subr.mxu0 0.0
    %1217 = vmatpush1.msra.mxu0 0.0
    %1218 = vmatprep.subr.mxu0 0.0
    %1219 = vmatpush1.msra.mxu0 0.0
    %1220 = vmatprep.mubr.f32.mxu0 0.0
    %1221 = vmatmul.mubr.f32.gmra.mrb[0].mxu0 %v1154
    %v1222 = vpop.f32.mrb[0].mxu0
    %v1223 = vadd.f32 0.0, %v1222
    %v1224 = vpop.f32.mrb[0].mxu0
    %v1225 = vadd.f32 0.0, %v1224
    %1226 = vdwg.mxu0
    %v1227 = vadd.f32 %v165, %v1223
    %v1228 = vadd.f32 %v167, %v1225
    %v1229 = vsel %vm249, %v1228, -inf
    %1230 = vmax.xlane.f32.xlu0 %v1229
    %v1231 = vpop.xlane.xlu0 %1230
    %v1232 = vsel %vm253, %v1228, -inf
    %1233 = vmax.xlane.f32.xlu0 %v1232
    %v1234 = vpop.xlane.xlu0 %1233
    %v1235 = vsel %vm171, %v1231, %v1234
    %v1236 = vsub.f32 %v1228, %v1235
    %v1237 = vmul.f32 %v1236, 1.442695
    %v1238 = vpow.pop %v1237
    %v1240 = vsel %vm261, %v1238, 0
    %1242 = vmatprep.subr.mxu0 0.0
    %1243 = vmatpush1.msra.mxu0 %v74
    %1244 = vmatprep.subr.mxu0 0.0
    %1245 = vmatpush1.msra.mxu0 0.0
    %1246 = vmatprep.subr.mxu0 0.0
    %1247 = vmatpush1.msra.mxu0 0.0
    %1248 = vmatprep.subr.mxu0 0.0
    %1249 = vmatpush1.msra.mxu0 0.0
    %1250 = vmatprep.subr.mxu0 0.0
    %1251 = vmatpush1.msra.mxu0 0.0
    %1252 = vmatprep.subr.mxu0 0.0
    %1253 = vmatpush1.msra.mxu0 0.0
    %1254 = vmatprep.subr.mxu0 0.0
    %1255 = vmatpush1.msra.mxu0 0.0
    %1256 = vmatprep.subr.mxu0 0.0
    %1257 = vmatpush1.msra.mxu0 0.0
    %1258 = vmatprep.subr.mxu0 0.0
    %1259 = vmatpush1.msra.mxu0 0.0
    %1260 = vmatprep.subr.mxu0 0.0
    %1261 = vmatpush1.msra.mxu0 0.0
    %1262 = vmatprep.subr.mxu0 0.0
    %1263 = vmatpush1.msra.mxu0 0.0
    %1264 = vmatprep.subr.mxu0 0.0
    %1265 = vmatpush1.msra.mxu0 0.0
    %1266 = vmatprep.subr.mxu0 0.0
    %1267 = vmatpush1.msra.mxu0 0.0
    %1268 = vmatprep.subr.mxu0 0.0
    %1269 = vmatpush1.msra.mxu0 0.0
    %1270 = vmatprep.subr.mxu0 0.0
    %1271 = vmatpush1.msra.mxu0 0.0
    %1272 = vmatprep.subr.mxu0 0.0
    %1273 = vmatpush1.msra.mxu0 0.0
    %1274 = vmatprep.subr.mxu0 0.0
    %1275 = vmatpush1.msra.mxu0 0.0
    %1276 = vmatprep.subr.mxu0 0.0
    %1277 = vmatpush1.msra.mxu0 0.0
    %1278 = vmatprep.subr.mxu0 0.0
    %1279 = vmatpush1.msra.mxu0 0.0
    %1280 = vmatprep.subr.mxu0 0.0
    %1281 = vmatpush1.msra.mxu0 0.0
    %1282 = vmatprep.subr.mxu0 0.0
    %1283 = vmatpush1.msra.mxu0 0.0
    %1284 = vmatprep.subr.mxu0 0.0
    %1285 = vmatpush1.msra.mxu0 0.0
    %1286 = vmatprep.subr.mxu0 0.0
    %1287 = vmatpush1.msra.mxu0 0.0
    %1288 = vmatprep.subr.mxu0 0.0
    %1289 = vmatpush1.msra.mxu0 0.0
    %1290 = vmatprep.subr.mxu0 0.0
    %1291 = vmatpush1.msra.mxu0 0.0
    %1292 = vmatprep.subr.mxu0 0.0
    %1293 = vmatpush1.msra.mxu0 0.0
    %1294 = vmatprep.subr.mxu0 0.0
    %1295 = vmatpush1.msra.mxu0 0.0
    %1296 = vmatprep.subr.mxu0 0.0
    %1297 = vmatpush1.msra.mxu0 0.0
    %1298 = vmatprep.subr.mxu0 0.0
    %1299 = vmatpush1.msra.mxu0 0.0
    %1300 = vmatprep.subr.mxu0 0.0
    %1301 = vmatpush1.msra.mxu0 0.0
    %1302 = vmatprep.subr.mxu0 0.0
    %1303 = vmatpush1.msra.mxu0 0.0
    %1304 = vmatprep.subr.mxu0 0.0
    %1305 = vmatpush1.msra.mxu0 0.0
    %1306 = vmatprep.mubr.f32.mxu0 0.0
    %1307 = vmatmul.mubr.f32.gmra.mrb[0].mxu0 %v1240
    %v1308 = vpop.f32.mrb[0].mxu0
    %v1309 = vadd.f32 0.0, %v1308
    %v1310 = vpop.f32.mrb[0].mxu0
    %1311 = vdwg.mxu0
    %1313 = vset.pattern.permute.xlu0 31
    %1314 = vperm.xlu0 %1313, %v1309
    %v1315 = vpop.permute.xlu0 %1314
    %1317 = vset.pattern.permute.xlu0 63
    %1318 = vperm.xlu0 %1317, %v1309
    %v1319 = vpop.permute.xlu0 %1318
    %v1321 = vsel %vm172, %v1315, %v1319
    %v1322 = vrcp.pop %v1321
    %v1323 = vmul.f32 %v1309, %v1322
    %v1324 = vsub.f32 1.0, %v1323
    %v1325 = vxor.u32 %v1227, 2147483648
    %v1326 = vmul.f32 %v1325, 1.442695
    %v1327 = vpow.pop %v1326
    %v1328 = vadd.f32 %v1327, 1.0
    %v1329 = vrcp.pop %v1328
    %v1330 = vmul.f32 1.0, %v1329
    %v1331 = vtanh.pop %v1227
    %1333 = vrot.lane.b32.xlu0 %v1324, 96
    %v1334 = vpop.permute.xlu0 %1333
    %v1336 = vmul.f32 %v1323, %v1334
    %1338 = vrot.lane.b32.xlu0 %v1336, 64
    %v1339 = vpop.permute.xlu0 %1338
    %v1341 = vmul.f32 %v1330, %v1339
    %v1342 = vsub.f32 %v1323, %v1336
    %1344 = vrot.lane.b32.xlu0 %v1342, 64
    %v1345 = vpop.permute.xlu0 %1344
    %v1347 = vadd.f32 %v1341, %v1345
    %1348 = vrot.lane.b32.xlu0 %v1336, 32
    %v1349 = vpop.permute.xlu0 %1348
    %v1351 = vmul.f32 %v1330, %v1349
    %v1352 = vsub.f32 %v1324, %v1349
    %v1353 = vadd.f32 %v1351, %v1352
    %v1355 = vrot.slane %v1131, 6
    %v1357 = vmul.f32 %v1347, %v1355
    %1359 = vrot.lane.b32.xlu0 %v1331, 64
    %v1360 = vpop.permute.xlu0 %1359
    %v1362 = vmul.f32 %v1353, %v1360
    %1364 = vrot.lane.b32.xlu0 %v1362, 32
    %v1365 = vpop.permute.xlu0 %1364
    %v1367 = vadd.f32 %v1357, %v1365
    %v1368 = vtanh.pop %v1367
    %1370 = vrot.lane.b32.xlu0 %v1368, 64
    %v1371 = vpop.permute.xlu0 %1370
    %v1373 = vmul.f32 %v1330, %v1371
    %1374 = vst.msk [vmem:[#allocation8 + $0x2] sm:$0x3] %vm394, %v1373
    %v1376 = vsel %vm85, %v1373, 0
    %1378 = vmatprep.subr.mxu0 %v65
    %1379 = vmatpush1.msra.mxu0 %v64
    %1380 = vmatprep.subr.mxu0 %v67
    %1381 = vmatpush1.msra.mxu0 %v66
    %1382 = vmatprep.subr.mxu0 %v69
    %1383 = vmatpush1.msra.mxu0 %v68
    %1384 = vmatprep.subr.mxu0 %v71
    %1385 = vmatpush1.msra.mxu0 %v70
    %1386 = vmatprep.subr.mxu0 0.0
    %1387 = vmatpush1.msra.mxu0 0.0
    %1388 = vmatprep.subr.mxu0 0.0
    %1389 = vmatpush1.msra.mxu0 0.0
    %1390 = vmatprep.subr.mxu0 0.0
    %1391 = vmatpush1.msra.mxu0 0.0
    %1392 = vmatprep.subr.mxu0 0.0
    %1393 = vmatpush1.msra.mxu0 0.0
    %1394 = vmatprep.subr.mxu0 0.0
    %1395 = vmatpush1.msra.mxu0 0.0
    %1396 = vmatprep.subr.mxu0 0.0
    %1397 = vmatpush1.msra.mxu0 0.0
    %1398 = vmatprep.subr.mxu0 0.0
    %1399 = vmatpush1.msra.mxu0 0.0
    %1400 = vmatprep.subr.mxu0 0.0
    %1401 = vmatpush1.msra.mxu0 0.0
    %1402 = vmatprep.subr.mxu0 0.0
    %1403 = vmatpush1.msra.mxu0 0.0
    %1404 = vmatprep.subr.mxu0 0.0
    %1405 = vmatpush1.msra.mxu0 0.0
    %1406 = vmatprep.subr.mxu0 0.0
    %1407 = vmatpush1.msra.mxu0 0.0
    %1408 = vmatprep.subr.mxu0 0.0
    %1409 = vmatpush1.msra.mxu0 0.0
    %1410 = vmatprep.subr.mxu0 0.0
    %1411 = vmatpush1.msra.mxu0 0.0
    %1412 = vmatprep.subr.mxu0 0.0
    %1413 = vmatpush1.msra.mxu0 0.0
    %1414 = vmatprep.subr.mxu0 0.0
    %1415 = vmatpush1.msra.mxu0 0.0
    %1416 = vmatprep.subr.mxu0 0.0
    %1417 = vmatpush1.msra.mxu0 0.0
    %1418 = vmatprep.subr.mxu0 0.0
    %1419 = vmatpush1.msra.mxu0 0.0
    %1420 = vmatprep.subr.mxu0 0.0
    %1421 = vmatpush1.msra.mxu0 0.0
    %1422 = vmatprep.subr.mxu0 0.0
    %1423 = vmatpush1.msra.mxu0 0.0
    %1424 = vmatprep.subr.mxu0 0.0
    %1425 = vmatpush1.msra.mxu0 0.0
    %1426 = vmatprep.subr.mxu0 0.0
    %1427 = vmatpush1.msra.mxu0 0.0
    %1428 = vmatprep.subr.mxu0 0.0
    %1429 = vmatpush1.msra.mxu0 0.0
    %1430 = vmatprep.subr.mxu0 0.0
    %1431 = vmatpush1.msra.mxu0 0.0
    %1432 = vmatprep.subr.mxu0 0.0
    %1433 = vmatpush1.msra.mxu0 0.0
    %1434 = vmatprep.subr.mxu0 0.0
    %1435 = vmatpush1.msra.mxu0 0.0
    %1436 = vmatprep.subr.mxu0 0.0
    %1437 = vmatpush1.msra.mxu0 0.0
    %1438 = vmatprep.subr.mxu0 0.0
    %1439 = vmatpush1.msra.mxu0 0.0
    %1440 = vmatprep.subr.mxu0 0.0
    %1441 = vmatpush1.msra.mxu0 0.0
    %1442 = vmatprep.mubr.f32.mxu0 0.0
    %1443 = vmatmul.mubr.f32.gmra.mrb[0].mxu0 %v1376
    %v1444 = vpop.f32.mrb[0].mxu0
    %v1445 = vadd.f32 0.0, %v1444
    %v1446 = vpop.f32.mrb[0].mxu0
    %v1447 = vadd.f32 0.0, %v1446
    %1448 = vdwg.mxu0
    %v1451 = vrot.slane %v1445, 6
    %v1452 = vrot.slane %v1447, 6
    %v1455 = vadd.f32 %v165, %v1451
    %v1456 = vadd.f32 %v167, %v1452
    %v1457 = vsel %vm478, %v1456, -inf
    %1458 = vmax.xlane.f32.xlu0 %v1457
    %v1459 = vpop.xlane.xlu0 %1458
    %v1460 = vsel %vm482, %v1456, -inf
    %1461 = vmax.xlane.f32.xlu0 %v1460
    %v1462 = vpop.xlane.xlu0 %1461
    %v1463 = vsel %vm171, %v1459, %v1462
    %v1464 = vsub.f32 %v1456, %v1463
    %v1465 = vmul.f32 %v1464, 1.442695
    %v1466 = vpow.pop %v1465
    %v1468 = vrot.slane %v1466, 2
    %v1469 = vsel %vm261, %v1468, 0
    %1471 = vmatprep.subr.mxu0 0.0
    %1472 = vmatpush1.msra.mxu0 %v74
    %1473 = vmatprep.subr.mxu0 0.0
    %1474 = vmatpush1.msra.mxu0 0.0
    %1475 = vmatprep.subr.mxu0 0.0
    %1476 = vmatpush1.msra.mxu0 0.0
    %1477 = vmatprep.subr.mxu0 0.0
    %1478 = vmatpush1.msra.mxu0 0.0
    %1479 = vmatprep.subr.mxu0 0.0
    %1480 = vmatpush1.msra.mxu0 0.0
    %1481 = vmatprep.subr.mxu0 0.0
    %1482 = vmatpush1.msra.mxu0 0.0
    %1483 = vmatprep.subr.mxu0 0.0
    %1484 = vmatpush1.msra.mxu0 0.0
    %1485 = vmatprep.subr.mxu0 0.0
    %1486 = vmatpush1.msra.mxu0 0.0
    %1487 = vmatprep.subr.mxu0 0.0
    %1488 = vmatpush1.msra.mxu0 0.0
    %1489 = vmatprep.subr.mxu0 0.0
    %1490 = vmatpush1.msra.mxu0 0.0
    %1491 = vmatprep.subr.mxu0 0.0
    %1492 = vmatpush1.msra.mxu0 0.0
    %1493 = vmatprep.subr.mxu0 0.0
    %1494 = vmatpush1.msra.mxu0 0.0
    %1495 = vmatprep.subr.mxu0 0.0
    %1496 = vmatpush1.msra.mxu0 0.0
    %1497 = vmatprep.subr.mxu0 0.0
    %1498 = vmatpush1.msra.mxu0 0.0
    %1499 = vmatprep.subr.mxu0 0.0
    %1500 = vmatpush1.msra.mxu0 0.0
    %1501 = vmatprep.subr.mxu0 0.0
    %1502 = vmatpush1.msra.mxu0 0.0
    %1503 = vmatprep.subr.mxu0 0.0
    %1504 = vmatpush1.msra.mxu0 0.0
    %1505 = vmatprep.subr.mxu0 0.0
    %1506 = vmatpush1.msra.mxu0 0.0
    %1507 = vmatprep.subr.mxu0 0.0
    %1508 = vmatpush1.msra.mxu0 0.0
    %1509 = vmatprep.subr.mxu0 0.0
    %1510 = vmatpush1.msra.mxu0 0.0
    %1511 = vmatprep.subr.mxu0 0.0
    %1512 = vmatpush1.msra.mxu0 0.0
    %1513 = vmatprep.subr.mxu0 0.0
    %1514 = vmatpush1.msra.mxu0 0.0
    %1515 = vmatprep.subr.mxu0 0.0
    %1516 = vmatpush1.msra.mxu0 0.0
    %1517 = vmatprep.subr.mxu0 0.0
    %1518 = vmatpush1.msra.mxu0 0.0
    %1519 = vmatprep.subr.mxu0 0.0
    %1520 = vmatpush1.msra.mxu0 0.0
    %1521 = vmatprep.subr.mxu0 0.0
    %1522 = vmatpush1.msra.mxu0 0.0
    %1523 = vmatprep.subr.mxu0 0.0
    %1524 = vmatpush1.msra.mxu0 0.0
    %1525 = vmatprep.subr.mxu0 0.0
    %1526 = vmatpush1.msra.mxu0 0.0
    %1527 = vmatprep.subr.mxu0 0.0
    %1528 = vmatpush1.msra.mxu0 0.0
    %1529 = vmatprep.subr.mxu0 0.0
    %1530 = vmatpush1.msra.mxu0 0.0
    %1531 = vmatprep.subr.mxu0 0.0
    %1532 = vmatpush1.msra.mxu0 0.0
    %1533 = vmatprep.subr.mxu0 0.0
    %1534 = vmatpush1.msra.mxu0 0.0
    %1535 = vmatprep.mubr.f32.mxu0 0.0
    %1536 = vmatmul.mubr.f32.gmra.mrb[0].mxu0 %v1469
    %v1537 = vpop.f32.mrb[0].mxu0
    %v1538 = vadd.f32 0.0, %v1537
    %v1539 = vpop.f32.mrb[0].mxu0
    %1540 = vdwg.mxu0
    %1542 = vset.pattern.permute.xlu0 31
    %1543 = vperm.xlu0 %1542, %v1538
    %v1544 = vpop.permute.xlu0 %1543
    %1546 = vset.pattern.permute.xlu0 63
    %1547 = vperm.xlu0 %1546, %v1538
    %v1548 = vpop.permute.xlu0 %1547
    %v1550 = vsel %vm172, %v1544, %v1548
    %v1551 = vrcp.pop %v1550
    %v1552 = vmul.f32 %v1538, %v1551
    %v1553 = vsub.f32 1.0, %v1552
    %v1554 = vxor.u32 %v1455, 2147483648
    %v1555 = vmul.f32 %v1554, 1.442695
    %v1556 = vpow.pop %v1555
    %v1557 = vadd.f32 %v1556, 1.0
    %v1558 = vrcp.pop %v1557
    %v1559 = vmul.f32 1.0, %v1558
    %v1560 = vtanh.pop %v1455
    %1562 = vrot.lane.b32.xlu0 %v1553, 96
    %v1563 = vpop.permute.xlu0 %1562
    %v1565 = vmul.f32 %v1552, %v1563
    %v1567 = vrot.slane %v1565, 6
    %1568 = vrot.lane.b32.xlu0 %v1567, 64
    %v1569 = vpop.permute.xlu0 %1568
    %v1571 = vmul.f32 %v1559, %v1569
    %v1572 = vsub.f32 %v1552, %v1565
    %v1574 = vrot.slane %v1572, 6
    %1575 = vrot.lane.b32.xlu0 %v1574, 64
    %v1576 = vpop.permute.xlu0 %1575
    %v1578 = vadd.f32 %v1571, %v1576
    %1579 = vrot.lane.b32.xlu0 %v1567, 32
    %v1580 = vpop.permute.xlu0 %1579
    %v1582 = vmul.f32 %v1559, %v1580
    %1583 = vrot.lane.b32.xlu0 %v1565, 32
    %v1584 = vpop.permute.xlu0 %1583
    %v1586 = vsub.f32 %v1553, %v1584
    %v1588 = vrot.slane %v1586, 6
    %v1590 = vadd.f32 %v1582, %v1588
    %v1592 = vrot.slane %v1367, 6
    %v1594 = vmul.f32 %v1578, %v1592
    %1596 = vrot.lane.b32.xlu0 %v1560, 64
    %v1597 = vpop.permute.xlu0 %1596
    %v1599 = vmul.f32 %v1590, %v1597
    %1601 = vrot.lane.b32.xlu0 %v1599, 32
    %v1602 = vpop.permute.xlu0 %1601
    %v1604 = vadd.f32 %v1594, %v1602
    %v1605 = vtanh.pop %v1604
    %1607 = vrot.lane.b32.xlu0 %v1605, 64
    %v1608 = vpop.permute.xlu0 %1607
    %v1610 = vmul.f32 %v1559, %v1608
    %v1613 = vunpack.c.l.s4 1983009808
    %v1614 = vunpack.c.0.s8 %v1613
    %v1615 = vlaneseq
    %v1616 = vshrl.u32 %v1615, 7
    %v1617 = vsub.s32 %v1614, %v1616
    %v1618 = vrot.slane %v1610, %v1617
    %v1619 = vcombine.high %v1618, %v1618
    %1620 = vrot.lane.b32.xlu0 %v1619, 32
    %v1621 = vpop.permute.xlu0 %1620
    %1623 = vst.msk [vmem:[#allocation8 + $0x2] sm:$0x3] %vm646, %v1621
    %v1624 = vrot.slane %v1610, 2
    %v1625 = vsel %vm85, %v1624, 0
    %1627 = vmatprep.subr.mxu0 %v65
    %1628 = vmatpush1.msra.mxu0 %v64
    %1629 = vmatprep.subr.mxu0 %v67
    %1630 = vmatpush1.msra.mxu0 %v66
    %1631 = vmatprep.subr.mxu0 %v69
    %1632 = vmatpush1.msra.mxu0 %v68
    %1633 = vmatprep.subr.mxu0 %v71
    %1634 = vmatpush1.msra.mxu0 %v70
    %1635 = vmatprep.subr.mxu0 0.0
    %1636 = vmatpush1.msra.mxu0 0.0
    %1637 = vmatprep.subr.mxu0 0.0
    %1638 = vmatpush1.msra.mxu0 0.0
    %1639 = vmatprep.subr.mxu0 0.0
    %1640 = vmatpush1.msra.mxu0 0.0
    %1641 = vmatprep.subr.mxu0 0.0
    %1642 = vmatpush1.msra.mxu0 0.0
    %1643 = vmatprep.subr.mxu0 0.0
    %1644 = vmatpush1.msra.mxu0 0.0
    %1645 = vmatprep.subr.mxu0 0.0
    %1646 = vmatpush1.msra.mxu0 0.0
    %1647 = vmatprep.subr.mxu0 0.0
    %1648 = vmatpush1.msra.mxu0 0.0
    %1649 = vmatprep.subr.mxu0 0.0
    %1650 = vmatpush1.msra.mxu0 0.0
    %1651 = vmatprep.subr.mxu0 0.0
    %1652 = vmatpush1.msra.mxu0 0.0
    %1653 = vmatprep.subr.mxu0 0.0
    %1654 = vmatpush1.msra.mxu0 0.0
    %1655 = vmatprep.subr.mxu0 0.0
    %1656 = vmatpush1.msra.mxu0 0.0
    %1657 = vmatprep.subr.mxu0 0.0
    %1658 = vmatpush1.msra.mxu0 0.0
    %1659 = vmatprep.subr.mxu0 0.0
    %1660 = vmatpush1.msra.mxu0 0.0
    %1661 = vmatprep.subr.mxu0 0.0
    %1662 = vmatpush1.msra.mxu0 0.0
    %1663 = vmatprep.subr.mxu0 0.0
    %1664 = vmatpush1.msra.mxu0 0.0
    %1665 = vmatprep.subr.mxu0 0.0
    %1666 = vmatpush1.msra.mxu0 0.0
    %1667 = vmatprep.subr.mxu0 0.0
    %1668 = vmatpush1.msra.mxu0 0.0
    %1669 = vmatprep.subr.mxu0 0.0
    %1670 = vmatpush1.msra.mxu0 0.0
    %1671 = vmatprep.subr.mxu0 0.0
    %1672 = vmatpush1.msra.mxu0 0.0
    %1673 = vmatprep.subr.mxu0 0.0
    %1674 = vmatpush1.msra.mxu0 0.0
    %1675 = vmatprep.subr.mxu0 0.0
    %1676 = vmatpush1.msra.mxu0 0.0
    %1677 = vmatprep.subr.mxu0 0.0
    %1678 = vmatpush1.msra.mxu0 0.0
    %1679 = vmatprep.subr.mxu0 0.0
    %1680 = vmatpush1.msra.mxu0 0.0
    %1681 = vmatprep.subr.mxu0 0.0
    %1682 = vmatpush1.msra.mxu0 0.0
    %1683 = vmatprep.subr.mxu0 0.0
    %1684 = vmatpush1.msra.mxu0 0.0
    %1685 = vmatprep.subr.mxu0 0.0
    %1686 = vmatpush1.msra.mxu0 0.0
    %1687 = vmatprep.subr.mxu0 0.0
    %1688 = vmatpush1.msra.mxu0 0.0
    %1689 = vmatprep.subr.mxu0 0.0
    %1690 = vmatpush1.msra.mxu0 0.0
    %1691 = vmatprep.mubr.f32.mxu0 0.0
    %1692 = vmatmul.mubr.f32.gmra.mrb[0].mxu0 %v1625
    %v1693 = vpop.f32.mrb[0].mxu0
    %v1694 = vadd.f32 0.0, %v1693
    %v1695 = vpop.f32.mrb[0].mxu0
    %v1696 = vadd.f32 0.0, %v1695
    %1697 = vdwg.mxu0
    %v1700 = vrot.slane %v1694, 4
    %v1701 = vrot.slane %v1696, 4
    %v1704 = vadd.f32 %v165, %v1700
    %v1705 = vadd.f32 %v167, %v1701
    %v1706 = vsel %vm730, %v1705, -inf
    %1707 = vmax.xlane.f32.xlu0 %v1706
    %v1708 = vpop.xlane.xlu0 %1707
    %v1709 = vsel %vm734, %v1705, -inf
    %1710 = vmax.xlane.f32.xlu0 %v1709
    %v1711 = vpop.xlane.xlu0 %1710
    %v1712 = vsel %vm171, %v1708, %v1711
    %v1713 = vsub.f32 %v1705, %v1712
    %v1714 = vmul.f32 %v1713, 1.442695
    %v1715 = vpow.pop %v1714
    %v1717 = vrot.slane %v1715, 4
    %v1718 = vsel %vm261, %v1717, 0
    %1720 = vmatprep.subr.mxu0 0.0
    %1721 = vmatpush1.msra.mxu0 %v74
    %1722 = vmatprep.subr.mxu0 0.0
    %1723 = vmatpush1.msra.mxu0 0.0
    %1724 = vmatprep.subr.mxu0 0.0
    %1725 = vmatpush1.msra.mxu0 0.0
    %1726 = vmatprep.subr.mxu0 0.0
    %1727 = vmatpush1.msra.mxu0 0.0
    %1728 = vmatprep.subr.mxu0 0.0
    %1729 = vmatpush1.msra.mxu0 0.0
    %1730 = vmatprep.subr.mxu0 0.0
    %1731 = vmatpush1.msra.mxu0 0.0
    %1732 = vmatprep.subr.mxu0 0.0
    %1733 = vmatpush1.msra.mxu0 0.0
    %1734 = vmatprep.subr.mxu0 0.0
    %1735 = vmatpush1.msra.mxu0 0.0
    %1736 = vmatprep.subr.mxu0 0.0
    %1737 = vmatpush1.msra.mxu0 0.0
    %1738 = vmatprep.subr.mxu0 0.0
    %1739 = vmatpush1.msra.mxu0 0.0
    %1740 = vmatprep.subr.mxu0 0.0
    %1741 = vmatpush1.msra.mxu0 0.0
    %1742 = vmatprep.subr.mxu0 0.0
    %1743 = vmatpush1.msra.mxu0 0.0
    %1744 = vmatprep.subr.mxu0 0.0
    %1745 = vmatpush1.msra.mxu0 0.0
    %1746 = vmatprep.subr.mxu0 0.0
    %1747 = vmatpush1.msra.mxu0 0.0
    %1748 = vmatprep.subr.mxu0 0.0
    %1749 = vmatpush1.msra.mxu0 0.0
    %1750 = vmatprep.subr.mxu0 0.0
    %1751 = vmatpush1.msra.mxu0 0.0
    %1752 = vmatprep.subr.mxu0 0.0
    %1753 = vmatpush1.msra.mxu0 0.0
    %1754 = vmatprep.subr.mxu0 0.0
    %1755 = vmatpush1.msra.mxu0 0.0
    %1756 = vmatprep.subr.mxu0 0.0
    %1757 = vmatpush1.msra.mxu0 0.0
    %1758 = vmatprep.subr.mxu0 0.0
    %1759 = vmatpush1.msra.mxu0 0.0
    %1760 = vmatprep.subr.mxu0 0.0
    %1761 = vmatpush1.msra.mxu0 0.0
    %1762 = vmatprep.subr.mxu0 0.0
    %1763 = vmatpush1.msra.mxu0 0.0
    %1764 = vmatprep.subr.mxu0 0.0
    %1765 = vmatpush1.msra.mxu0 0.0
    %1766 = vmatprep.subr.mxu0 0.0
    %1767 = vmatpush1.msra.mxu0 0.0
    %1768 = vmatprep.subr.mxu0 0.0
    %1769 = vmatpush1.msra.mxu0 0.0
    %1770 = vmatprep.subr.mxu0 0.0
    %1771 = vmatpush1.msra.mxu0 0.0
    %1772 = vmatprep.subr.mxu0 0.0
    %1773 = vmatpush1.msra.mxu0 0.0
    %1774 = vmatprep.subr.mxu0 0.0
    %1775 = vmatpush1.msra.mxu0 0.0
    %1776 = vmatprep.subr.mxu0 0.0
    %1777 = vmatpush1.msra.mxu0 0.0
    %1778 = vmatprep.subr.mxu0 0.0
    %1779 = vmatpush1.msra.mxu0 0.0
    %1780 = vmatprep.subr.mxu0 0.0
    %1781 = vmatpush1.msra.mxu0 0.0
    %1782 = vmatprep.subr.mxu0 0.0
    %1783 = vmatpush1.msra.mxu0 0.0
    %1784 = vmatprep.mubr.f32.mxu0 0.0
    %1785 = vmatmul.mubr.f32.gmra.mrb[0].mxu0 %v1718
    %v1786 = vpop.f32.mrb[0].mxu0
    %v1787 = vadd.f32 0.0, %v1786
    %v1788 = vpop.f32.mrb[0].mxu0
    %1789 = vdwg.mxu0
    %1791 = vset.pattern.permute.xlu0 31
    %1792 = vperm.xlu0 %1791, %v1787
    %v1793 = vpop.permute.xlu0 %1792
    %1795 = vset.pattern.permute.xlu0 63
    %1796 = vperm.xlu0 %1795, %v1787
    %v1797 = vpop.permute.xlu0 %1796
    %v1799 = vsel %vm172, %v1793, %v1797
    %v1800 = vrcp.pop %v1799
    %v1801 = vmul.f32 %v1787, %v1800
    %v1802 = vsub.f32 1.0, %v1801
    %v1803 = vxor.u32 %v1704, 2147483648
    %v1804 = vmul.f32 %v1803, 1.442695
    %v1805 = vpow.pop %v1804
    %v1806 = vadd.f32 %v1805, 1.0
    %v1807 = vrcp.pop %v1806
    %v1808 = vmul.f32 1.0, %v1807
    %v1809 = vtanh.pop %v1704
    %1811 = vrot.lane.b32.xlu0 %v1802, 96
    %v1812 = vpop.permute.xlu0 %1811
    %v1814 = vmul.f32 %v1801, %v1812
    %v1816 = vrot.slane %v1814, 4
    %1817 = vrot.lane.b32.xlu0 %v1816, 64
    %v1818 = vpop.permute.xlu0 %1817
    %v1820 = vmul.f32 %v1808, %v1818
    %v1821 = vsub.f32 %v1801, %v1814
    %v1823 = vrot.slane %v1821, 4
    %1824 = vrot.lane.b32.xlu0 %v1823, 64
    %v1825 = vpop.permute.xlu0 %1824
    %v1827 = vadd.f32 %v1820, %v1825
    %1828 = vrot.lane.b32.xlu0 %v1816, 32
    %v1829 = vpop.permute.xlu0 %1828
    %v1831 = vmul.f32 %v1808, %v1829
    %1832 = vrot.lane.b32.xlu0 %v1814, 32
    %v1833 = vpop.permute.xlu0 %1832
    %v1835 = vsub.f32 %v1802, %v1833
    %v1837 = vrot.slane %v1835, 4
    %v1839 = vadd.f32 %v1831, %v1837
    %v1841 = vrot.slane %v1604, 6
    %v1843 = vmul.f32 %v1827, %v1841
    %1845 = vrot.lane.b32.xlu0 %v1809, 64
    %v1846 = vpop.permute.xlu0 %1845
    %v1848 = vmul.f32 %v1839, %v1846
    %1850 = vrot.lane.b32.xlu0 %v1848, 32
    %v1851 = vpop.permute.xlu0 %1850
    %v1853 = vadd.f32 %v1843, %v1851
    %v1854 = vtanh.pop %v1853
    %1856 = vrot.lane.b32.xlu0 %v1854, 64
    %v1857 = vpop.permute.xlu0 %1856
    %v1859 = vmul.f32 %v1808, %v1857
    %v1861 = vcombine.high %v1859, %v1859
    %v1863 = vunpack.c.l.s4 1983009808
    %v1864 = vunpack.c.0.s8 %v1863
    %v1865 = vlaneseq
    %v1866 = vshrl.u32 %v1865, 7
    %v1867 = vsub.s32 %v1864, %v1866
    %v1868 = vrot.slane %v1861, %v1867
    %1869 = vrot.lane.b32.xlu0 %v1868, 64
    %v1870 = vpop.permute.xlu0 %1869
    %1872 = vst.msk [vmem:[#allocation8 + $0x2] sm:$0x3] %vm898, %v1870
    %v1873 = vrot.slane %v1859, 4
    %v1874 = vsel %vm85, %v1873, 0
    %1876 = vmatprep.subr.mxu0 %v65
    %1877 = vmatpush1.msra.mxu0 %v64
    %1878 = vmatprep.subr.mxu0 %v67
    %1879 = vmatpush1.msra.mxu0 %v66
    %1880 = vmatprep.subr.mxu0 %v69
    %1881 = vmatpush1.msra.mxu0 %v68
    %1882 = vmatprep.subr.mxu0 %v71
    %1883 = vmatpush1.msra.mxu0 %v70
    %1884 = vmatprep.subr.mxu0 0.0
    %1885 = vmatpush1.msra.mxu0 0.0
    %1886 = vmatprep.subr.mxu0 0.0
    %1887 = vmatpush1.msra.mxu0 0.0
    %1888 = vmatprep.subr.mxu0 0.0
    %1889 = vmatpush1.msra.mxu0 0.0
    %1890 = vmatprep.subr.mxu0 0.0
    %1891 = vmatpush1.msra.mxu0 0.0
    %1892 = vmatprep.subr.mxu0 0.0
    %1893 = vmatpush1.msra.mxu0 0.0
    %1894 = vmatprep.subr.mxu0 0.0
    %1895 = vmatpush1.msra.mxu0 0.0
    %1896 = vmatprep.subr.mxu0 0.0
    %1897 = vmatpush1.msra.mxu0 0.0
    %1898 = vmatprep.subr.mxu0 0.0
    %1899 = vmatpush1.msra.mxu0 0.0
    %1900 = vmatprep.subr.mxu0 0.0
    %1901 = vmatpush1.msra.mxu0 0.0
    %1902 = vmatprep.subr.mxu0 0.0
    %1903 = vmatpush1.msra.mxu0 0.0
    %1904 = vmatprep.subr.mxu0 0.0
    %1905 = vmatpush1.msra.mxu0 0.0
    %1906 = vmatprep.subr.mxu0 0.0
    %1907 = vmatpush1.msra.mxu0 0.0
    %1908 = vmatprep.subr.mxu0 0.0
    %1909 = vmatpush1.msra.mxu0 0.0
    %1910 = vmatprep.subr.mxu0 0.0
    %1911 = vmatpush1.msra.mxu0 0.0
    %1912 = vmatprep.subr.mxu0 0.0
    %1913 = vmatpush1.msra.mxu0 0.0
    %1914 = vmatprep.subr.mxu0 0.0
    %1915 = vmatpush1.msra.mxu0 0.0
    %1916 = vmatprep.subr.mxu0 0.0
    %1917 = vmatpush1.msra.mxu0 0.0
    %1918 = vmatprep.subr.mxu0 0.0
    %1919 = vmatpush1.msra.mxu0 0.0
    %1920 = vmatprep.subr.mxu0 0.0
    %1921 = vmatpush1.msra.mxu0 0.0
    %1922 = vmatprep.subr.mxu0 0.0
    %1923 = vmatpush1.msra.mxu0 0.0
    %1924 = vmatprep.subr.mxu0 0.0
    %1925 = vmatpush1.msra.mxu0 0.0
    %1926 = vmatprep.subr.mxu0 0.0
    %1927 = vmatpush1.msra.mxu0 0.0
    %1928 = vmatprep.subr.mxu0 0.0
    %1929 = vmatpush1.msra.mxu0 0.0
    %1930 = vmatprep.subr.mxu0 0.0
    %1931 = vmatpush1.msra.mxu0 0.0
    %1932 = vmatprep.subr.mxu0 0.0
    %1933 = vmatpush1.msra.mxu0 0.0
    %1934 = vmatprep.subr.mxu0 0.0
    %1935 = vmatpush1.msra.mxu0 0.0
    %1936 = vmatprep.subr.mxu0 0.0
    %1937 = vmatpush1.msra.mxu0 0.0
    %1938 = vmatprep.subr.mxu0 0.0
    %1939 = vmatpush1.msra.mxu0 0.0
    %1940 = vmatprep.mubr.f32.mxu0 0.0
    %1941 = vmatmul.mubr.f32.gmra.mrb[0].mxu0 %v1874
    %v1942 = vpop.f32.mrb[0].mxu0
    %v1943 = vadd.f32 0.0, %v1942
    %v1944 = vpop.f32.mrb[0].mxu0
    %v1945 = vadd.f32 0.0, %v1944
    %1946 = vdwg.mxu0
    %v1949 = vrot.slane %v1943, 2
    %v1950 = vrot.slane %v1945, 2
    %v1953 = vadd.f32 %v165, %v1949
    %v1954 = vadd.f32 %v167, %v1950
    %v1955 = vsel %vm982, %v1954, -inf
    %1956 = vmax.xlane.f32.xlu0 %v1955
    %v1957 = vpop.xlane.xlu0 %1956
    %v1958 = vsel %vm986, %v1954, -inf
    %1959 = vmax.xlane.f32.xlu0 %v1958
    %v1960 = vpop.xlane.xlu0 %1959
    %v1961 = vsel %vm171, %v1957, %v1960
    %v1962 = vsub.f32 %v1954, %v1961
    %v1963 = vmul.f32 %v1962, 1.442695
    %v1964 = vpow.pop %v1963
    %v1966 = vrot.slane %v1964, 6
    %v1967 = vsel %vm261, %v1966, 0
    %1969 = vmatprep.subr.mxu0 0.0
    %1970 = vmatpush1.msra.mxu0 %v74
    %1971 = vmatprep.subr.mxu0 0.0
    %1972 = vmatpush1.msra.mxu0 0.0
    %1973 = vmatprep.subr.mxu0 0.0
    %1974 = vmatpush1.msra.mxu0 0.0
    %1975 = vmatprep.subr.mxu0 0.0
    %1976 = vmatpush1.msra.mxu0 0.0
    %1977 = vmatprep.subr.mxu0 0.0
    %1978 = vmatpush1.msra.mxu0 0.0
    %1979 = vmatprep.subr.mxu0 0.0
    %1980 = vmatpush1.msra.mxu0 0.0
    %1981 = vmatprep.subr.mxu0 0.0
    %1982 = vmatpush1.msra.mxu0 0.0
    %1983 = vmatprep.subr.mxu0 0.0
    %1984 = vmatpush1.msra.mxu0 0.0
    %1985 = vmatprep.subr.mxu0 0.0
    %1986 = vmatpush1.msra.mxu0 0.0
    %1987 = vmatprep.subr.mxu0 0.0
    %1988 = vmatpush1.msra.mxu0 0.0
    %1989 = vmatprep.subr.mxu0 0.0
    %1990 = vmatpush1.msra.mxu0 0.0
    %1991 = vmatprep.subr.mxu0 0.0
    %1992 = vmatpush1.msra.mxu0 0.0
    %1993 = vmatprep.subr.mxu0 0.0
    %1994 = vmatpush1.msra.mxu0 0.0
    %1995 = vmatprep.subr.mxu0 0.0
    %1996 = vmatpush1.msra.mxu0 0.0
    %1997 = vmatprep.subr.mxu0 0.0
    %1998 = vmatpush1.msra.mxu0 0.0
    %1999 = vmatprep.subr.mxu0 0.0
    %2000 = vmatpush1.msra.mxu0 0.0
    %2001 = vmatprep.subr.mxu0 0.0
    %2002 = vmatpush1.msra.mxu0 0.0
    %2003 = vmatprep.subr.mxu0 0.0
    %2004 = vmatpush1.msra.mxu0 0.0
    %2005 = vmatprep.subr.mxu0 0.0
    %2006 = vmatpush1.msra.mxu0 0.0
    %2007 = vmatprep.subr.mxu0 0.0
    %2008 = vmatpush1.msra.mxu0 0.0
    %2009 = vmatprep.subr.mxu0 0.0
    %2010 = vmatpush1.msra.mxu0 0.0
    %2011 = vmatprep.subr.mxu0 0.0
    %2012 = vmatpush1.msra.mxu0 0.0
    %2013 = vmatprep.subr.mxu0 0.0
    %2014 = vmatpush1.msra.mxu0 0.0
    %2015 = vmatprep.subr.mxu0 0.0
    %2016 = vmatpush1.msra.mxu0 0.0
    %2017 = vmatprep.subr.mxu0 0.0
    %2018 = vmatpush1.msra.mxu0 0.0
    %2019 = vmatprep.subr.mxu0 0.0
    %2020 = vmatpush1.msra.mxu0 0.0
    %2021 = vmatprep.subr.mxu0 0.0
    %2022 = vmatpush1.msra.mxu0 0.0
    %2023 = vmatprep.subr.mxu0 0.0
    %2024 = vmatpush1.msra.mxu0 0.0
    %2025 = vmatprep.subr.mxu0 0.0
    %2026 = vmatpush1.msra.mxu0 0.0
    %2027 = vmatprep.subr.mxu0 0.0
    %2028 = vmatpush1.msra.mxu0 0.0
    %2029 = vmatprep.subr.mxu0 0.0
    %2030 = vmatpush1.msra.mxu0 0.0
    %2031 = vmatprep.subr.mxu0 0.0
    %2032 = vmatpush1.msra.mxu0 0.0
    %2033 = vmatprep.mubr.f32.mxu0 0.0
    %2034 = vmatmul.mubr.f32.gmra.mrb[0].mxu0 %v1967
    %v2035 = vpop.f32.mrb[0].mxu0
    %v2036 = vadd.f32 0.0, %v2035
    %v2037 = vpop.f32.mrb[0].mxu0
    %2038 = vdwg.mxu0
    %2040 = vset.pattern.permute.xlu0 31
    %2041 = vperm.xlu0 %2040, %v2036
    %v2042 = vpop.permute.xlu0 %2041
    %2044 = vset.pattern.permute.xlu0 63
    %2045 = vperm.xlu0 %2044, %v2036
    %v2046 = vpop.permute.xlu0 %2045
    %v2048 = vsel %vm172, %v2042, %v2046
    %v2049 = vrcp.pop %v2048
    %v2050 = vmul.f32 %v2036, %v2049
    %v2051 = vsub.f32 1.0, %v2050
    %v2052 = vxor.u32 %v1953, 2147483648
    %v2053 = vmul.f32 %v2052, 1.442695
    %v2054 = vpow.pop %v2053
    %v2055 = vadd.f32 %v2054, 1.0
    %v2056 = vrcp.pop %v2055
    %v2057 = vmul.f32 1.0, %v2056
    %v2058 = vtanh.pop %v1953
    %2060 = vrot.lane.b32.xlu0 %v2051, 96
    %v2061 = vpop.permute.xlu0 %2060
    %v2063 = vmul.f32 %v2050, %v2061
    %v2065 = vrot.slane %v2063, 2
    %2066 = vrot.lane.b32.xlu0 %v2065, 64
    %v2067 = vpop.permute.xlu0 %2066
    %v2069 = vmul.f32 %v2057, %v2067
    %v2070 = vsub.f32 %v2050, %v2063
    %v2072 = vrot.slane %v2070, 2
    %2073 = vrot.lane.b32.xlu0 %v2072, 64
    %v2074 = vpop.permute.xlu0 %2073
    %v2076 = vadd.f32 %v2069, %v2074
    %2077 = vrot.lane.b32.xlu0 %v2065, 32
    %v2078 = vpop.permute.xlu0 %2077
    %v2080 = vmul.f32 %v2057, %v2078
    %2081 = vrot.lane.b32.xlu0 %v2063, 32
    %v2082 = vpop.permute.xlu0 %2081
    %v2084 = vsub.f32 %v2051, %v2082
    %v2086 = vrot.slane %v2084, 2
    %v2088 = vadd.f32 %v2080, %v2086
    %v2090 = vrot.slane %v1853, 6
    %v2092 = vmul.f32 %v2076, %v2090
    %2094 = vrot.lane.b32.xlu0 %v2058, 64
    %v2095 = vpop.permute.xlu0 %2094
    %v2097 = vmul.f32 %v2088, %v2095
    %2099 = vrot.lane.b32.xlu0 %v2097, 32
    %v2100 = vpop.permute.xlu0 %2099
    %v2102 = vadd.f32 %v2092, %v2100
    %v2103 = vtanh.pop %v2102
    %2105 = vrot.lane.b32.xlu0 %v2103, 64
    %v2106 = vpop.permute.xlu0 %2105
    %v2108 = vmul.f32 %v2057, %v2106
    %v2110 = vcombine.high %v2108, %v2108
    %v2112 = vunpack.c.l.s4 1983009808
    %v2113 = vunpack.c.0.s8 %v2112
    %v2114 = vlaneseq
    %v2115 = vshrl.u32 %v2114, 7
    %v2116 = vsub.s32 %v2113, %v2115
    %v2117 = vrot.slane %v2110, %v2116
    %v2118 = vcombine.high %v2117, %v2117
    %2119 = vrot.lane.b32.xlu0 %v2118, 96
    %v2120 = vpop.permute.xlu0 %2119
    %2122 = vst.msk [vmem:[#allocation8 + $0x2] sm:$0x3] %vm1151, %v2120
    // Predicated region
    $region26: #{tpu_custom_call.1} parent=1 // pred_check
      _
    $region27: #{tpu_custom_call.1} parent=1 // pred_check_branch
      %2124 = sbr.rel (0) target = $region29
    $region28: #{tpu_custom_call.1} parent=1 // pred_region
      %s2126 = ssub.s32 64, 64
      %2127 = vsyncadd [#allocation4], %s2126
      %s2129 = sshll.u32 [#allocation8], 4
      %s2130 = int_to_ptr.vmem [resolvable:$true] %s2129
      %2132 = dma.vmem_to_hbm [thread:$0]  %s2130, 64, %s3, [#allocation4]
    $region29: #{tpu_custom_call.1} parent=1 // pred_fallthru
      _
    // Predicated region
    $region30: #{tpu_custom_call.1} parent=1 // pred_check
      _
    $region31: #{tpu_custom_call.1} parent=1 // pred_check_branch
      %2134 = sbr.rel (0) target = $region33
    $region32: #{tpu_custom_call.1} parent=1 // pred_region
      %2135 = dma.done [#allocation4], 64
    $region33: #{tpu_custom_call.1} parent=1 // pred_fallthru
      _
    %2136 = vsyncpa [#allocation3], 1
    %2137 = vsyncpa [#allocation6], 1
    %2138 = vsyncpa [#allocation4], 1

</llo_original>
